<compile_context>
chip_gen: v5e
topology: v5e:2x2
jax: 0.10.0
libtpu: 0.0.40
codegen_flags: <defaults>
</compile_context>

<pallas_src>
import functools
import numpy as np
import jax
import jax.numpy as jnp
from jax import lax
from jax.experimental import pallas as pl
from jax.experimental.pallas import tpu as pltpu


# --------------------------------------------------------------------------
# Host-side: 1-D separable Gaussian filter matrices (scipy 'reflect' boundary)
# --------------------------------------------------------------------------
def _reflect_index(i: int, n: int) -> int:
    # scipy.ndimage 'reflect' boundary: (d c b a | a b c d | d c b a)
    period = 2 * n
    i = i % period
    if i >= n:
        i = period - 1 - i
    return i


@functools.lru_cache(maxsize=None)
def _gaussian_matrix(n: int, sigma: float, truncate: float = 4.0) -> np.ndarray:
    """Dense G with (G @ v) == scipy gaussian_filter1d(v, sigma, mode='reflect')."""
    radius = int(truncate * sigma + 0.5)
    offs = np.arange(-radius, radius + 1)
    wts = np.exp(-0.5 * (offs / sigma) ** 2)
    wts = wts / wts.sum()
    g = np.zeros((n, n), dtype=np.float32)
    for i in range(n):
        for off, wt in zip(offs, wts):
            g[i, _reflect_index(i + off, n)] += wt
    return g


def _reflect_coord(t, n):
    """Continuous 'reflect' fold of sample coordinates into [0, n-1]
    (scipy map_coordinates mode='reflect', order=1)."""
    period = 2.0 * n
    u = t + 0.5
    u = u - period * jnp.floor(u / period)
    u = jnp.where(u >= n, period - u, u)
    return jnp.clip(u - 0.5, 0.0, n - 1.0)


def _round_up(x: int, m: int) -> int:
    return (x + m - 1) // m * m


def _pick_row_tile(b: int, h: int, wp: int):
    """Largest row tile TR (multiple of 8) whose per-step f32 intermediates
    (WR + WC + G) fit ~6 MiB, keeping >= 4 grid steps so both v7x TCs stay fed."""
    budget = 6 * 1024 * 1024
    for tr in (64, 32, 16, 8):
        hp = _round_up(h, tr)
        interm = tr * wp * 4 * (hp + 2 * wp)
        if interm > budget:
            continue
        if tr > 8 and b * (hp // tr) < 4:
            continue
        return tr, hp
    return 8, _round_up(h, 8)


# --------------------------------------------------------------------------
# Pallas kernel: fused tent-weight bilinear interpolation for one row tile
# --------------------------------------------------------------------------
def _interp_kernel(yy_ref, xx_ref, imgt_ref, out_ref, *, hp, wp):
    yy = yy_ref[0, 0]          # (1, TR*Wp) f32 row coordinates in [0, H-1]
    xx = xx_ref[0, 0]          # (1, TR*Wp) f32 col coordinates in [0, W-1]
    img_t = imgt_ref[0]        # (Wp, Hp) bf16 transposed plane: img_t[c, r] = img[r, c]
    trw = yy.shape[-1]

    # Row tent weights for every output pixel of this tile, stacked along lanes.
    r_src = lax.broadcasted_iota(jnp.int32, (hp, trw), 0).astype(jnp.float32)
    wr = jnp.maximum(0.0, 1.0 - jnp.abs(yy - r_src)).astype(jnp.bfloat16)   # (Hp, TRW)

    # One wide bf16 MXU matmul: G[c, m] = sum_r img[r, c] * wr[r, m]
    g = jnp.dot(img_t, wr, preferred_element_type=jnp.float32)              # (Wp, TRW)

    # Column tent weights (VPU) + reduce over source columns (sublane reduce).
    c_src = lax.broadcasted_iota(jnp.int32, (wp, trw), 0).astype(jnp.float32)
    wc = jnp.maximum(0.0, 1.0 - jnp.abs(xx - c_src))                        # (Wp, TRW)
    out_ref[0, 0] = jnp.sum(g * wc, axis=0, keepdims=True).astype(out_ref.dtype)


def _elastic_interp(yy_flat, xx_flat, imgt_p, *, hp, wp, tr, out_dtype):
    b, ht = yy_flat.shape[0], yy_flat.shape[1]
    trw = tr * wp
    kern = functools.partial(_interp_kernel, hp=hp, wp=wp)
    out = pl.pallas_call(
        kern,
        out_shape=jax.ShapeDtypeStruct((b, ht, 1, trw), out_dtype),
        grid_spec=pltpu.PrefetchScalarGridSpec(
            num_scalar_prefetch=0,
            grid=(b, ht),
            in_specs=[
                pl.BlockSpec((1, 1, 1, trw), lambda i, t: (i, t, 0, 0)),  # yy tile
                pl.BlockSpec((1, 1, 1, trw), lambda i, t: (i, t, 0, 0)),  # xx tile
                pl.BlockSpec((1, wp, hp), lambda i, t: (i, 0, 0)),        # resident plane
            ],
            out_specs=pl.BlockSpec((1, 1, 1, trw), lambda i, t: (i, t, 0, 0)),
        ),
        compiler_params=pltpu.CompilerParams(
            dimension_semantics=("parallel", "parallel"),
            vmem_limit_bytes=32 * 1024 * 1024,  # safe headroom on v7x (64 MiB) and v5e/v6e
        ),
    )(yy_flat, xx_flat, imgt_p)
    return out.reshape(b, hp, wp)


# --------------------------------------------------------------------------
# Module wrapper
# --------------------------------------------------------------------------
class ElasticTransform:
    """Pallas/TPU port of the PyTorch ElasticTransform module."""

    def __init__(self, alpha: float = 50.0, sigma: float = 5.0, p: float = 0.5):
        self.alpha = float(alpha)
        self.sigma = float(sigma)
        self.p = float(p)

    def _displaced_coords(self, k_noise, b, h, w):
        """Smoothed displacement fields + reflected absolute sample coordinates (XLA)."""
        gy = jnp.asarray(_gaussian_matrix(h, self.sigma))        # (H, H)
        gx = jnp.asarray(_gaussian_matrix(w, self.sigma))        # (W, W)
        # noise[:, 0] -> dy (row) field, noise[:, 1] -> dx (col) field, U[-1, 1)
        noise = jax.random.uniform(k_noise, (b, 2, h, w), jnp.float32,
                                   minval=-1.0, maxval=1.0)
        sm = jnp.einsum('ij,bcjk->bcik', gy, noise)               # filter along rows
        disp = self.alpha * jnp.einsum('bcik,lk->bcil', sm, gx)   # filter along cols
        rows = jnp.arange(h, dtype=jnp.float32)[None, :, None]
        cols = jnp.arange(w, dtype=jnp.float32)[None, None, :]
        yy = _reflect_coord(rows + disp[:, 0], h)                 # (B, H, W) in [0, H-1]
        xx = _reflect_coord(cols + disp[:, 1], w)                 # (B, H, W) in [0, W-1]
        return yy, xx

    def __call__(self, x, key):
        # TODO(synk): host RNG (random.random / np.random.rand) of the torch module
        # cannot be bit-reproduced; deterministic jax.random draws from `key` instead.
        k_apply, k_noise = jax.random.split(key)
        apply = jax.random.uniform(k_apply) <= self.p             # random.random() > p -> skip

        three_d = (x.ndim == 3)
        x4 = x[None] if three_d else x                            # (B, C, H, W)
        b, c, h, w = x4.shape

        yy, xx = self._displaced_coords(k_noise, b, h, w)

        # ---- padding / tiling (lane-dense W, sublane-aligned row tiles) ----
        wp = _round_up(w, 128)
        tr, hp = _pick_row_tile(b, h, wp)
        ht = hp // tr
        trw = tr * wp
        pad_hw = ((0, 0), (0, hp - h), (0, wp - w))
        yy_flat = jnp.pad(yy, pad_hw).reshape(b, ht, 1, trw)
        xx_flat = jnp.pad(xx, pad_hw).reshape(b, ht, 1, trw)

        imgt = jnp.swapaxes(x4[:, 0], 1, 2)                       # (B, W, H)
        imgt_p = jnp.pad(imgt, ((0, 0), (0, wp - w), (0, hp - h))).astype(jnp.bfloat16)

        out_p = _elastic_interp(yy_flat, xx_flat, imgt_p,
                                hp=hp, wp=wp, tr=tr, out_dtype=x4.dtype)  # (B, Hp, Wp)
        new_ch0 = out_p[:, :h, :w]

        if three_d:
            # TODO(synk): torch returns the full (C,H,W) tensor when skipped but only
            # (1,H,W) when applied; JAX needs a static shape, so (1,H,W) is used.
            return jnp.where(apply, new_ch0[0][None], x[0][None])

        x_new = x4.at[:, 0].set(new_ch0)
        return jnp.where(apply, x_new, x4)


# --------------------------------------------------------------------------
if __name__ == "__main__":
    key = jax.random.PRNGKey(0)
    kx, kt = jax.random.split(key)
    x = jax.random.normal(kx, (2, 4, 16, 16), jnp.float32)

    transform = ElasticTransform(alpha=50.0, sigma=5.0, p=1.0)
    y = jax.block_until_ready(transform(x, kt))

    assert y.shape == x.shape and y.dtype == x.dtype
    assert bool(jnp.all(jnp.isfinite(y)))
    # channels 1.. must be untouched
    assert bool(jnp.array_equal(y[:, 1:], x[:, 1:]))

    # Numerical check against a gather-based pure-JAX bilinear reference using the
    # same displaced coordinates (tolerance covers the bf16 image/weight cast).
    def _ref_bilinear(img, yy, xx):
        hh, ww = img.shape
        y0 = jnp.clip(jnp.floor(yy), 0, hh - 1).astype(jnp.int32)
        x0 = jnp.clip(jnp.floor(xx), 0, ww - 1).astype(jnp.int32)
        y1 = jnp.minimum(y0 + 1, hh - 1)
        x1 = jnp.minimum(x0 + 1, ww - 1)
        fy = yy - y0.astype(jnp.float32)
        fx = xx - x0.astype(jnp.float32)
        return (img[y0, x0] * (1 - fy) * (1 - fx) + img[y0, x1] * (1 - fy) * fx
                + img[y1, x0] * fy * (1 - fx) + img[y1, x1] * fy * fx)

    _, k_noise = jax.random.split(kt)
    yy, xx = transform._displaced_coords(k_noise, x.shape[0], x.shape[2], x.shape[3])
    ref0 = jnp.stack([_ref_bilinear(x[i, 0], yy[i], xx[i]) for i in range(x.shape[0])])
    assert float(jnp.max(jnp.abs(y[:, 0] - ref0))) < 0.1

    print("KERNEL_OK")
</pallas_src>

<mosaic_0001>
module attributes {stable_mosaic.version = 11 : i64} {
  func.func @_interp_kernel(%arg0: i32, %arg1: i32, %arg2: memref<1x1x1x1024xf32, #tpu.memory_space<vmem>>, %arg3: memref<1x1x1x1024xf32, #tpu.memory_space<vmem>>, %arg4: memref<1x128x16xbf16, #tpu.memory_space<vmem>>, %arg5: memref<1x1x1x1024xf32, #tpu.memory_space<vmem>>) attributes {dimension_semantics = [#tpu.dimension_semantics<parallel>, #tpu.dimension_semantics<parallel>], iteration_bounds = array<i64: 2, 2>, scalar_prefetch = 0 : i64, scratch_operands = 0 : i64, tpu.core_type = #tpu.core_type<tc>, window_params = [{transform_indices = @transform_0, window_bounds = array<i64: 1, 1, 1, 1024>}, {transform_indices = @transform_1, window_bounds = array<i64: 1, 1, 1, 1024>}, {transform_indices = @transform_2, window_bounds = array<i64: 1, 128, 16>}, {transform_indices = @transform_3, window_bounds = array<i64: 1, 1, 1, 1024>}]} {
    %c0 = arith.constant 0 : index
    %c0_0 = arith.constant 0 : index
    %c0_1 = arith.constant 0 : index
    %c0_2 = arith.constant 0 : index
    %0 = vector.load %arg2[%c0, %c0_0, %c0_1, %c0_2] : memref<1x1x1x1024xf32, #tpu.memory_space<vmem>>, vector<1x1x1x1024xf32>
    %1 = vector.shape_cast %0 : vector<1x1x1x1024xf32> to vector<1x1024xf32>
    %c0_3 = arith.constant 0 : index
    %c0_4 = arith.constant 0 : index
    %c0_5 = arith.constant 0 : index
    %c0_6 = arith.constant 0 : index
    %2 = vector.load %arg3[%c0_3, %c0_4, %c0_5, %c0_6] : memref<1x1x1x1024xf32, #tpu.memory_space<vmem>>, vector<1x1x1x1024xf32>
    %3 = vector.shape_cast %2 : vector<1x1x1x1024xf32> to vector<1x1024xf32>
    %c0_7 = arith.constant 0 : index
    %c0_8 = arith.constant 0 : index
    %c0_9 = arith.constant 0 : index
    %4 = vector.load %arg4[%c0_7, %c0_8, %c0_9] : memref<1x128x16xbf16, #tpu.memory_space<vmem>>, vector<1x128x16xbf16>
    %5 = vector.shape_cast %4 : vector<1x128x16xbf16> to vector<128x16xbf16>
    %6 = tpu.iota {dimensions = array<i32: 0>} : vector<16x1024xi32>
    %7 = arith.sitofp %6 : vector<16x1024xi32> to vector<16x1024xf32>
    %8 = vector.broadcast %1 : vector<1x1024xf32> to vector<16x1024xf32>
    %9 = arith.subf %8, %7 : vector<16x1024xf32>
    %10 = math.absf %9 : vector<16x1024xf32>
    %cst = arith.constant 1.000000e+00 : f32
    %11 = vector.broadcast %cst : f32 to vector<16x1024xf32>
    %12 = arith.subf %11, %10 : vector<16x1024xf32>
    %cst_10 = arith.constant 0.000000e+00 : f32
    %13 = vector.broadcast %cst_10 : f32 to vector<16x1024xf32>
    %14 = arith.maximumf %13, %12 : vector<16x1024xf32>
    %15 = arith.truncf %14 : vector<16x1024xf32> to vector<16x1024xbf16>
    %cst_11 = arith.constant dense<0.000000e+00> : vector<128x1024xf32>
    %16 = tpu.matmul %5, %15, %cst_11 {dimension_numbers = #tpu.dot_dimension_numbers<[1], [0], [0], [1], [0, 0, 1, 1], [], []>} : vector<128x16xbf16>, vector<16x1024xbf16>, vector<128x1024xf32> -> vector<128x1024xf32>
    %17 = tpu.iota {dimensions = array<i32: 0>} : vector<128x1024xi32>
    %18 = arith.sitofp %17 : vector<128x1024xi32> to vector<128x1024xf32>
    %19 = vector.broadcast %3 : vector<1x1024xf32> to vector<128x1024xf32>
    %20 = arith.subf %19, %18 : vector<128x1024xf32>
    %21 = math.absf %20 : vector<128x1024xf32>
    %cst_12 = arith.constant 1.000000e+00 : f32
    %22 = vector.broadcast %cst_12 : f32 to vector<128x1024xf32>
    %23 = arith.subf %22, %21 : vector<128x1024xf32>
    %cst_13 = arith.constant 0.000000e+00 : f32
    %24 = vector.broadcast %cst_13 : f32 to vector<128x1024xf32>
    %25 = arith.maximumf %24, %23 : vector<128x1024xf32>
    %26 = arith.mulf %16, %25 : vector<128x1024xf32>
    %cst_14 = arith.constant dense<0.000000e+00> : vector<1024xf32>
    %27 = vector.multi_reduction <add>, %26, %cst_14 [0] : vector<128x1024xf32> to vector<1024xf32>
    %28 = vector.shape_cast %27 : vector<1024xf32> to vector<1x1024xf32>
    %c0_15 = arith.constant 0 : index
    %c0_16 = arith.constant 0 : index
    %c0_17 = arith.constant 0 : index
    %c0_18 = arith.constant 0 : index
    %29 = vector.load %arg5[%c0_15, %c0_16, %c0_17, %c0_18] : memref<1x1x1x1024xf32, #tpu.memory_space<vmem>>, vector<1x1x1x1024xf32>
    %30 = vector.shape_cast %29 : vector<1x1x1x1024xf32> to vector<1x1024xf32>
    %31 = vector.shape_cast %28 : vector<1x1024xf32> to vector<1x1x1x1024xf32>
    tpu.vector_store %arg5[%c0_15, %c0_16, %c0_17, %c0_18], %31 {strides = array<i32>} : memref<1x1x1x1024xf32, #tpu.memory_space<vmem>>, vector<1x1x1x1024xf32>,
    return
  }
  func.func @transform_0(%arg0: i32, %arg1: i32) -> (i32, i32, i32, i32) {
    %c0_i32 = arith.constant 0 : i32
    %c0_i32_0 = arith.constant 0 : i32
    %c0_i32_1 = arith.constant 0 : i32
    return %arg0, %arg1, %c0_i32, %c0_i32_0 : i32, i32, i32, i32
  }
  func.func @transform_1(%arg0: i32, %arg1: i32) -> (i32, i32, i32, i32) {
    %c0_i32 = arith.constant 0 : i32
    %c0_i32_0 = arith.constant 0 : i32
    %c0_i32_1 = arith.constant 0 : i32
    return %arg0, %arg1, %c0_i32, %c0_i32_0 : i32, i32, i32, i32
  }
  func.func @transform_2(%arg0: i32, %arg1: i32) -> (i32, i32, i32) {
    %c0_i32 = arith.constant 0 : i32
    %c0_i32_0 = arith.constant 0 : i32
    %c0_i32_1 = arith.constant 0 : i32
    return %arg0, %c0_i32, %c0_i32_0 : i32, i32, i32
  }
  func.func @transform_3(%arg0: i32, %arg1: i32) -> (i32, i32, i32, i32) {
    %c0_i32 = arith.constant 0 : i32
    %c0_i32_0 = arith.constant 0 : i32
    %c0_i32_1 = arith.constant 0 : i32
    return %arg0, %arg1, %c0_i32, %c0_i32_0 : i32, i32, i32, i32
  }
}

</mosaic_0001>

<llo_original>
// kernel: tpu_custom_call.1
$region0: #{tpu_custom_call.1}
  #allocation0 [shape = 'u32[]', space=smem, size = 0x4, offset = 0x4, fixed_abs, tag = 'smem constant byte address 0x4 - core index']
  #allocation1 [shape = 'u32[72,128]{1,0:T(1,128)}', space=vmem, size = 0x9000, scoped, tag = 'internal scratch']
  %s0 = inlined_call_operand.vmem [shape: f32[2,2,1,1024], index: 0, kind: input, shape index: {}]
  %s1 = inlined_call_operand.vmem [shape: f32[2,2,1,1024], index: 1, kind: input, shape index: {}]
  %s2 = inlined_call_operand.vmem [shape: bf16[2,128,16], index: 2, kind: input, shape index: {}]
  %s3 = inlined_call_operand.hbm [shape: f32[2,2,1,1024], index: 3, kind: output, shape index: {}]
  %s4 = sld [smem:[#allocation0]]
  $region45: #{tpu_custom_call.1} parent=0
    _
  %s6 = ssub.s32 1, %s4
  %s7 = scalar_select 0, %s6, %s4
  $region1: #{tpu_custom_call.1} parent=0
    #allocation2 [shape = 'u8[8192]{0}', space=vmem, size = 0x2000, scoped, tag = 'output window, operand 0']
    #allocation3 [shape = 's32[2]{0}', space=sflag, size = 0x8, scoped, tag = 'scoped memory for tpu_custom_call.1']
    %8 = vsyncpa [#allocation3], 0
    %s9 = scalar_lea.sflag [#allocation3], 1
    %10 = vsyncpa %s9, 0
    loop: start=0, step=1, limit=6
    $region2: #{tpu_custom_call.1} parent=1 // loop_pre_header
      _
    $region3: #{tpu_custom_call.1} parent=1 // loop_header
      %s12 = sphi 0, %s16
      %p13 = scmp.ge.s32.totalorder %s12, 6
      %s19 = sphi 0, %s31
      %s20 = sphi 0, %s27
      %s21 = sphi 0, %s19
      %s22 = sphi 0, %s20
      %s23 = sphi 0, %s21
      %s24 = sphi 0, %s22
      %s36 = sphi 0, %s38
      %s39 = sphi 0, %s36
      %s40 = sphi 0, %s39
      %s56 = sphi 0, %s40
      %s64 = sphi 0, %s66
      %s67 = sphi 0, %s64
      %s68 = sphi 0, %s67
      %s84 = sphi 0, %s68
      %s90 = sphi 0, %s92
      %s93 = sphi 0, %s90
      %s94 = sphi 0, %s93
      %s110 = sphi 0, %s94
      %s118 = sphi 0, %s120
      %s121 = sphi 0, %s118
      %s122 = sphi 0, %s121
      %s138 = sphi 0, %s122
    $region4: #{tpu_custom_call.1} parent=1 // loop_header_branch
      %15 = sbr.rel (%p13) target = $region8
    $region5: #{tpu_custom_call.1} parent=1 // loop_body
      %s17 = ssub.s32 %s12, 1
      %s18 = ssub.s32 %s12, 2
      %s25 = sadd.s32 1, %s20
      %p26 = scmp.ge.s32.totalorder %s25, 2
      %s27 = scalar_select %p26, 0, %s25
      %s28 = sadd.s32 1, %s19
      %s29 = scalar_select %p26, %s28, %s19
      %p30 = scmp.ge.s32.totalorder %s29, 2
      %s31 = scalar_select %p30, 0, %s29
      %s32 = ssub.s32 %s19, %s31
      %s33 = ssub.s32 %s20, %s27
      %s34 = sor.u32 %s32, %s33
      %p35 = scmp.eq.s32.totalorder %s34, 0
      %s37 = sadd.s32 %s36, 1
      %s38 = scalar_select %p35, %s36, %s37
      %p41 = pneg %p35
      %p42 = scmp.eq.s32.totalorder %s12, 3
      %p43 = por %p41, %p42
      %p44 = scmp.ne.s32.totalorder %s36, %s39
      %p45 = scmp.eq.s32.totalorder %s12, 0
      %p46 = por %p44, %p45
      %p47 = scmp.ne.s32.totalorder %s36, %s39
      %p48 = scmp.eq.s32.totalorder %s17, 3
      %p49 = por %p47, %p48
      %p50 = scmp.ne.s32.totalorder %s39, %s40
      %p51 = scmp.eq.s32.totalorder %s17, 0
      %p52 = por %p50, %p51
      %p53 = scmp.ne.s32.totalorder %s39, %s40
      %p54 = scmp.eq.s32.totalorder %s18, 3
      %p55 = por %p53, %p54
      %p57 = scmp.ne.s32.totalorder %s40, %s56
      %p58 = scmp.eq.s32.totalorder %s18, 0
      %p59 = por %p57, %p58
      %s60 = ssub.s32 %s19, %s31
      %s61 = ssub.s32 %s20, %s27
      %s62 = sor.u32 %s60, %s61
      %p63 = scmp.eq.s32.totalorder %s62, 0
      %s65 = sadd.s32 %s64, 1
      %s66 = scalar_select %p63, %s64, %s65
      %p69 = pneg %p63
      %p70 = scmp.eq.s32.totalorder %s12, 3
      %p71 = por %p69, %p70
      %p72 = scmp.ne.s32.totalorder %s64, %s67
      %p73 = scmp.eq.s32.totalorder %s12, 0
      %p74 = por %p72, %p73
      %p75 = scmp.ne.s32.totalorder %s64, %s67
      %p76 = scmp.eq.s32.totalorder %s17, 3
      %p77 = por %p75, %p76
      %p78 = scmp.ne.s32.totalorder %s67, %s68
      %p79 = scmp.eq.s32.totalorder %s17, 0
      %p80 = por %p78, %p79
      %p81 = scmp.ne.s32.totalorder %s67, %s68
      %p82 = scmp.eq.s32.totalorder %s18, 3
      %p83 = por %p81, %p82
      %p85 = scmp.ne.s32.totalorder %s68, %s84
      %p86 = scmp.eq.s32.totalorder %s18, 0
      %p87 = por %p85, %p86
      %s88 = ssub.s32 %s19, %s31
      %p89 = scmp.eq.s32.totalorder %s88, 0
      %s91 = sadd.s32 %s90, 1
      %s92 = scalar_select %p89, %s90, %s91
      %p95 = pneg %p89
      %p96 = scmp.eq.s32.totalorder %s12, 3
      %p97 = por %p95, %p96
      %p98 = scmp.ne.s32.totalorder %s90, %s93
      %p99 = scmp.eq.s32.totalorder %s12, 0
      %p100 = por %p98, %p99
      %p101 = scmp.ne.s32.totalorder %s90, %s93
      %p102 = scmp.eq.s32.totalorder %s17, 3
      %p103 = por %p101, %p102
      %p104 = scmp.ne.s32.totalorder %s93, %s94
      %p105 = scmp.eq.s32.totalorder %s17, 0
      %p106 = por %p104, %p105
      %p107 = scmp.ne.s32.totalorder %s93, %s94
      %p108 = scmp.eq.s32.totalorder %s18, 3
      %p109 = por %p107, %p108
      %p111 = scmp.ne.s32.totalorder %s94, %s110
      %p112 = scmp.eq.s32.totalorder %s18, 0
      %p113 = por %p111, %p112
      %s114 = ssub.s32 %s19, %s31
      %s115 = ssub.s32 %s20, %s27
      %s116 = sor.u32 %s114, %s115
      %p117 = scmp.eq.s32.totalorder %s116, 0
      %s119 = sadd.s32 %s118, 1
      %s120 = scalar_select %p117, %s118, %s119
      %p123 = pneg %p117
      %p124 = scmp.eq.s32.totalorder %s12, 3
      %p125 = por %p123, %p124
      %p126 = scmp.ne.s32.totalorder %s118, %s121
      %p127 = scmp.eq.s32.totalorder %s12, 0
      %p128 = por %p126, %p127
      %p129 = scmp.ne.s32.totalorder %s118, %s121
      %p130 = scmp.eq.s32.totalorder %s17, 3
      %p131 = por %p129, %p130
      %p132 = scmp.ne.s32.totalorder %s121, %s122
      %p133 = scmp.eq.s32.totalorder %s17, 0
      %p134 = por %p132, %p133
      %p135 = scmp.ne.s32.totalorder %s121, %s122
      %p136 = scmp.eq.s32.totalorder %s18, 3
      %p137 = por %p135, %p136
      %p139 = scmp.ne.s32.totalorder %s122, %s138
      %p140 = scmp.eq.s32.totalorder %s18, 0
      %p141 = por %p139, %p140
      %p142 = scmp.le.s32.totalorder 1, %s12
      %p143 = scmp.lt.s32.totalorder %s12, 5
      %p144 = pnand %p142, %p143
      %p145 = pneg %p144
      // Predicated region
      $region9: #{tpu_custom_call.1} parent=5 // pred_check
        _
      $region10: #{tpu_custom_call.1} parent=5 // pred_check_branch
        %147 = sbr.rel (%p144) target = $region12
      $region11: #{tpu_custom_call.1} parent=5 // pred_region
        %s148 = ssub.s32 %s12, 1
      $region12: #{tpu_custom_call.1} parent=5 // pred_fallthru
        _
      %p149 = scmp.lt.s32.totalorder %s12, 4
      // Predicated region
      $region13: #{tpu_custom_call.1} parent=5 // pred_check
        %p150 = pneg %p149
      $region14: #{tpu_custom_call.1} parent=5 // pred_check_branch
        %152 = sbr.rel (%p150) target = $region16
      $region15: #{tpu_custom_call.1} parent=5 // pred_region
        // Predicated region
        $region17: #{tpu_custom_call.1} parent=15 // pred_check
          %p153 = pneg %p46
        $region18: #{tpu_custom_call.1} parent=15 // pred_check_branch
          %155 = sbr.rel (%p153) target = $region20
        $region19: #{tpu_custom_call.1} parent=15 // pred_region
          %p156 = scmp.lt.s32.totalorder %s19, 1
          %s157 = scalar_select %p156, %s19, 1
          %p158 = scmp.lt.s32.totalorder %s20, 1
          %s159 = scalar_select %p158, %s20, 1
          %s160 = smul.addr %s159, 8
          %s161 = smul.addr %s157, 16
          %s162 = sadd.s32 %s160, %s161
          %s163 = scalar_lea.vmem %s0, %s162
        $region20: #{tpu_custom_call.1} parent=15 // pred_fallthru
          _
        // Predicated region
        $region21: #{tpu_custom_call.1} parent=15 // pred_check
          %p164 = pneg %p74
        $region22: #{tpu_custom_call.1} parent=15 // pred_check_branch
          %166 = sbr.rel (%p164) target = $region24
        $region23: #{tpu_custom_call.1} parent=15 // pred_region
          %p167 = scmp.lt.s32.totalorder %s19, 1
          %s168 = scalar_select %p167, %s19, 1
          %p169 = scmp.lt.s32.totalorder %s20, 1
          %s170 = scalar_select %p169, %s20, 1
          %s171 = smul.addr %s170, 8
          %s172 = smul.addr %s168, 16
          %s173 = sadd.s32 %s171, %s172
          %s174 = scalar_lea.vmem %s1, %s173
        $region24: #{tpu_custom_call.1} parent=15 // pred_fallthru
          _
        // Predicated region
        $region25: #{tpu_custom_call.1} parent=15 // pred_check
          %p175 = pneg %p100
        $region26: #{tpu_custom_call.1} parent=15 // pred_check_branch
          %177 = sbr.rel (%p175) target = $region28
        $region27: #{tpu_custom_call.1} parent=15 // pred_region
          %p178 = scmp.lt.s32.totalorder %s19, 1
          %s179 = scalar_select %p178, %s19, 1
          %s180 = smul.addr %s179, 16
          %s181 = smul.addr %s180, 4
          %s182 = scalar_lea.vmem %s2, %s181
        $region28: #{tpu_custom_call.1} parent=15 // pred_fallthru
          _
      $region16: #{tpu_custom_call.1} parent=5 // pred_fallthru
        _
      %p183 = scmp.le.s32.totalorder 1, %s12
      %p184 = scmp.lt.s32.totalorder %s12, 5
      %p185 = pnand %p183, %p184
      %p186 = pneg %p185
      // Predicated region
      $region29: #{tpu_custom_call.1} parent=5 // pred_check
        _
      $region30: #{tpu_custom_call.1} parent=5 // pred_check_branch
        %188 = sbr.rel (%p185) target = $region32
      $region31: #{tpu_custom_call.1} parent=5 // pred_region
        %s189 = ssub.s32 %s12, 1
        %p190 = scmp.lt.s32.totalorder %s21, 1
        %s191 = scalar_select %p190, %s21, 1
        %p192 = scmp.lt.s32.totalorder %s22, 1
        %s193 = scalar_select %p192, %s22, 1
        %s194 = smul.addr %s193, 8
        %s195 = smul.addr %s191, 16
        %s196 = sadd.s32 %s194, %s195
        %s197 = scalar_lea.vmem %s0, %s196
        %p198 = pneg %p52
        %p199 = pneg %p49
        %p200 = scmp.lt.s32.totalorder %s21, 1
        %s201 = scalar_select %p200, %s21, 1
        %p202 = scmp.lt.s32.totalorder %s22, 1
        %s203 = scalar_select %p202, %s22, 1
        %s204 = smul.addr %s203, 8
        %s205 = smul.addr %s201, 16
        %s206 = sadd.s32 %s204, %s205
        %s207 = scalar_lea.vmem %s1, %s206
        %p208 = pneg %p80
        %p209 = pneg %p77
        %p210 = scmp.lt.s32.totalorder %s21, 1
        %s211 = scalar_select %p210, %s21, 1
        %s212 = smul.addr %s211, 16
        %s213 = smul.addr %s212, 4
        %s214 = scalar_lea.vmem %s2, %s213
        %p215 = pneg %p106
        %p216 = pneg %p103
        %p217 = pneg %p134
        %p218 = pneg %p131
        %s219 = sand.u32 %s121, 1
        %s220 = scalar_lea.sflag [#allocation3], %s219
        %s221 = sand.u32 %s121, 1
        %s222 = smul.addr %s221, 8
        %s223 = scalar_lea.vmem [#allocation2], %s222
        %p224 = scmp.lt.s32.totalorder %s21, 1
        %s225 = scalar_select %p224, %s21, 1
        %p226 = scmp.lt.s32.totalorder %s22, 1
        %s227 = scalar_select %p226, %s22, 1
        %s228 = smul.addr %s227, 8
        %s229 = smul.addr %s225, 16
        %s230 = sadd.s32 %s228, %s229
        %s231 = scalar_lea.vmem %s0, %s230
        %p232 = scmp.lt.s32.totalorder %s21, 1
        %s233 = scalar_select %p232, %s21, 1
        %p234 = scmp.lt.s32.totalorder %s22, 1
        %s235 = scalar_select %p234, %s22, 1
        %s236 = smul.addr %s235, 8
        %s237 = smul.addr %s233, 16
        %s238 = sadd.s32 %s236, %s237
        %s239 = scalar_lea.vmem %s1, %s238
        %p240 = scmp.lt.s32.totalorder %s21, 1
        %s241 = scalar_select %p240, %s21, 1
        %s242 = smul.addr %s241, 16
        %s243 = smul.addr %s242, 4
        %s244 = scalar_lea.vmem %s2, %s243
        %v246 = vld [vmem:[%s231] sm:$0xff]
        %v247 = vld [vmem:[%s239] sm:$0xff]
        %v248 = vld [vmem:[%s244] sm:$0xf]
        %v249 = vld [vmem:[%s244 + $0x4] sm:$0xf]
        %v250 = vld [vmem:[%s244 + $0x8] sm:$0xf]
        %v251 = vld [vmem:[%s244 + $0xc] sm:$0xf]
        %v252 = vld [vmem:[%s244 + $0x10] sm:$0xf]
        %v253 = vld [vmem:[%s244 + $0x14] sm:$0xf]
        %v254 = vld [vmem:[%s244 + $0x18] sm:$0xf]
        %v255 = vld [vmem:[%s244 + $0x1c] sm:$0xf]
        %v256 = vld [vmem:[%s244 + $0x20] sm:$0xf]
        %v257 = vld [vmem:[%s244 + $0x24] sm:$0xf]
        %v258 = vld [vmem:[%s244 + $0x28] sm:$0xf]
        %v259 = vld [vmem:[%s244 + $0x2c] sm:$0xf]
        %v260 = vld [vmem:[%s244 + $0x30] sm:$0xf]
        %v261 = vld [vmem:[%s244 + $0x34] sm:$0xf]
        %v262 = vld [vmem:[%s244 + $0x38] sm:$0xf]
        %v263 = vld [vmem:[%s244 + $0x3c] sm:$0xf]
        %v264 = vlaneseq
        %v265 = vshrl.u32 %v264, 7
        %v266 = vadd.s32 %v265, 8
        %v267 = vcvt.s32.f32 %v265
        %v268 = vcvt.s32.f32 %v266
        %v270 = vperm.slane %v246, 0
        %v271 = vperm.slane %v246, 1
        %v272 = vperm.slane %v246, 2
        %v273 = vperm.slane %v246, 3
        %v274 = vperm.slane %v246, 4
        %v275 = vperm.slane %v246, 5
        %v276 = vperm.slane %v246, 6
        %v277 = vperm.slane %v246, 7
        %v286 = vsub.f32 %v270, %v267
        %v287 = vsub.f32 %v271, %v267
        %v288 = vsub.f32 %v272, %v267
        %v289 = vsub.f32 %v273, %v267
        %v290 = vsub.f32 %v274, %v267
        %v291 = vsub.f32 %v275, %v267
        %v292 = vsub.f32 %v276, %v267
        %v293 = vsub.f32 %v277, %v267
        %v294 = vsub.f32 %v270, %v268
        %v295 = vsub.f32 %v271, %v268
        %v296 = vsub.f32 %v272, %v268
        %v297 = vsub.f32 %v273, %v268
        %v298 = vsub.f32 %v274, %v268
        %v299 = vsub.f32 %v275, %v268
        %v300 = vsub.f32 %v276, %v268
        %v301 = vsub.f32 %v277, %v268
        %v302 = vand.u32 2147483647, %v286
        %v303 = vand.u32 2147483647, %v287
        %v304 = vand.u32 2147483647, %v288
        %v305 = vand.u32 2147483647, %v289
        %v306 = vand.u32 2147483647, %v290
        %v307 = vand.u32 2147483647, %v291
        %v308 = vand.u32 2147483647, %v292
        %v309 = vand.u32 2147483647, %v293
        %v310 = vand.u32 2147483647, %v294
        %v311 = vand.u32 2147483647, %v295
        %v312 = vand.u32 2147483647, %v296
        %v313 = vand.u32 2147483647, %v297
        %v314 = vand.u32 2147483647, %v298
        %v315 = vand.u32 2147483647, %v299
        %v316 = vand.u32 2147483647, %v300
        %v317 = vand.u32 2147483647, %v301
        %v318 = vsub.f32 1.0, %v302
        %v319 = vsub.f32 1.0, %v303
        %v320 = vsub.f32 1.0, %v304
        %v321 = vsub.f32 1.0, %v305
        %v322 = vsub.f32 1.0, %v306
        %v323 = vsub.f32 1.0, %v307
        %v324 = vsub.f32 1.0, %v308
        %v325 = vsub.f32 1.0, %v309
        %v326 = vsub.f32 1.0, %v310
        %v327 = vsub.f32 1.0, %v311
        %v328 = vsub.f32 1.0, %v312
        %v329 = vsub.f32 1.0, %v313
        %v330 = vsub.f32 1.0, %v314
        %v331 = vsub.f32 1.0, %v315
        %v332 = vsub.f32 1.0, %v316
        %v333 = vsub.f32 1.0, %v317
        %v334 = vmax.f32 %v318, 0.0
        %v335 = vmax.f32 %v319, 0.0
        %v336 = vmax.f32 %v320, 0.0
        %v337 = vmax.f32 %v321, 0.0
        %v338 = vmax.f32 %v322, 0.0
        %v339 = vmax.f32 %v323, 0.0
        %v340 = vmax.f32 %v324, 0.0
        %v341 = vmax.f32 %v325, 0.0
        %v342 = vmax.f32 %v326, 0.0
        %v343 = vmax.f32 %v327, 0.0
        %v344 = vmax.f32 %v328, 0.0
        %v345 = vmax.f32 %v329, 0.0
        %v346 = vmax.f32 %v330, 0.0
        %v347 = vmax.f32 %v331, 0.0
        %v348 = vmax.f32 %v332, 0.0
        %v349 = vmax.f32 %v333, 0.0
        %v350 = vpack.c.bf16 %v342, %v334
        %v351 = vpack.c.bf16 %v343, %v335
        %v352 = vpack.c.bf16 %v344, %v336
        %v353 = vpack.c.bf16 %v345, %v337
        %v354 = vpack.c.bf16 %v346, %v338
        %v355 = vpack.c.bf16 %v347, %v339
        %v356 = vpack.c.bf16 %v348, %v340
        %v357 = vpack.c.bf16 %v349, %v341
        %v374 = vunpack.c.l.b16 %v248
        %v375 = vunpack.c.l.b16 %v249
        %v376 = vunpack.c.l.b16 %v250
        %v377 = vunpack.c.l.b16 %v251
        %v378 = vunpack.c.l.b16 %v252
        %v379 = vunpack.c.l.b16 %v253
        %v380 = vunpack.c.l.b16 %v254
        %v381 = vunpack.c.l.b16 %v255
        %v382 = vunpack.c.l.b16 %v256
        %v383 = vunpack.c.l.b16 %v257
        %v384 = vunpack.c.l.b16 %v258
        %v385 = vunpack.c.l.b16 %v259
        %v386 = vunpack.c.l.b16 %v260
        %v387 = vunpack.c.l.b16 %v261
        %v388 = vunpack.c.l.b16 %v262
        %v389 = vunpack.c.l.b16 %v263
        %v390 = vpack.c.b16 %v375, %v374
        %v391 = vpack.c.b16 %v377, %v376
        %v392 = vpack.c.b16 %v379, %v378
        %v393 = vpack.c.b16 %v381, %v380
        %v394 = vpack.c.b16 %v383, %v382
        %v395 = vpack.c.b16 %v385, %v384
        %v396 = vpack.c.b16 %v387, %v386
        %v397 = vpack.c.b16 %v389, %v388
        %vm398 = vcmask 130048
        %v400 = vsel %vm398, %v390, 0
        %v403 = vsel %vm398, %v391, 0
        %v406 = vsel %vm398, %v392, 0
        %v409 = vsel %vm398, %v393, 0
        %v412 = vsel %vm398, %v394, 0
        %v415 = vsel %vm398, %v395, 0
        %v418 = vsel %vm398, %v396, 0
        %v421 = vsel %vm398, %v397, 0
        %423 = vmatpush.bf16.msra.mxu0 0
        %424 = vmatpush.bf16.msra.mxu0 0
        %425 = vmatpush.bf16.msra.mxu0 0
        %426 = vmatpush.bf16.msra.mxu0 0
        %427 = vmatpush.bf16.msra.mxu0 0
        %428 = vmatpush.bf16.msra.mxu0 0
        %429 = vmatpush.bf16.msra.mxu0 0
        %430 = vmatpush.bf16.msra.mxu0 %v350
        %431 = vmatmul.bf16.gmra.mxu0 %v400
        %v432 = vpop.f32.mrf.mxu0
        %v433 = vadd.f32 0.0, %v432
        %v434 = vpop.f32.mrf.mxu0
        %v435 = vadd.f32 0.0, %v434
        %436 = vmatmul.bf16.gmra.mxu0 %v403
        %v437 = vpop.f32.mrf.mxu0
        %v438 = vadd.f32 0.0, %v437
        %v439 = vpop.f32.mrf.mxu0
        %v440 = vadd.f32 0.0, %v439
        %441 = vmatmul.bf16.gmra.mxu0 %v406
        %v442 = vpop.f32.mrf.mxu0
        %v443 = vadd.f32 0.0, %v442
        %v444 = vpop.f32.mrf.mxu0
        %v445 = vadd.f32 0.0, %v444
        %446 = vmatmul.bf16.gmra.mxu0 %v409
        %v447 = vpop.f32.mrf.mxu0
        %v448 = vadd.f32 0.0, %v447
        %v449 = vpop.f32.mrf.mxu0
        %v450 = vadd.f32 0.0, %v449
        %451 = vmatmul.bf16.gmra.mxu0 %v412
        %v452 = vpop.f32.mrf.mxu0
        %v453 = vadd.f32 0.0, %v452
        %v454 = vpop.f32.mrf.mxu0
        %v455 = vadd.f32 0.0, %v454
        %456 = vmatmul.bf16.gmra.mxu0 %v415
        %v457 = vpop.f32.mrf.mxu0
        %v458 = vadd.f32 0.0, %v457
        %v459 = vpop.f32.mrf.mxu0
        %v460 = vadd.f32 0.0, %v459
        %461 = vmatmul.bf16.gmra.mxu0 %v418
        %v462 = vpop.f32.mrf.mxu0
        %v463 = vadd.f32 0.0, %v462
        %v464 = vpop.f32.mrf.mxu0
        %v465 = vadd.f32 0.0, %v464
        %466 = vmatmul.bf16.gmra.mxu0 %v421
        %v467 = vpop.f32.mrf.mxu0
        %v468 = vadd.f32 0.0, %v467
        %v469 = vpop.f32.mrf.mxu0
        %v470 = vadd.f32 0.0, %v469
        %471 = vdwg.mxu0
        %472 = vmatpush.bf16.msra.mxu0 0
        %473 = vmatpush.bf16.msra.mxu0 0
        %474 = vmatpush.bf16.msra.mxu0 0
        %475 = vmatpush.bf16.msra.mxu0 0
        %476 = vmatpush.bf16.msra.mxu0 0
        %477 = vmatpush.bf16.msra.mxu0 0
        %478 = vmatpush.bf16.msra.mxu0 0
        %479 = vmatpush.bf16.msra.mxu0 %v351
        %480 = vmatmul.bf16.gmra.mxu0 %v400
        %v481 = vpop.f32.mrf.mxu0
        %v482 = vadd.f32 0.0, %v481
        %v483 = vpop.f32.mrf.mxu0
        %v484 = vadd.f32 0.0, %v483
        %485 = vmatmul.bf16.gmra.mxu0 %v403
        %v486 = vpop.f32.mrf.mxu0
        %v487 = vadd.f32 0.0, %v486
        %v488 = vpop.f32.mrf.mxu0
        %v489 = vadd.f32 0.0, %v488
        %490 = vmatmul.bf16.gmra.mxu0 %v406
        %v491 = vpop.f32.mrf.mxu0
        %v492 = vadd.f32 0.0, %v491
        %v493 = vpop.f32.mrf.mxu0
        %v494 = vadd.f32 0.0, %v493
        %495 = vmatmul.bf16.gmra.mxu0 %v409
        %v496 = vpop.f32.mrf.mxu0
        %v497 = vadd.f32 0.0, %v496
        %v498 = vpop.f32.mrf.mxu0
        %v499 = vadd.f32 0.0, %v498
        %500 = vmatmul.bf16.gmra.mxu0 %v412
        %v501 = vpop.f32.mrf.mxu0
        %v502 = vadd.f32 0.0, %v501
        %v503 = vpop.f32.mrf.mxu0
        %v504 = vadd.f32 0.0, %v503
        %505 = vmatmul.bf16.gmra.mxu0 %v415
        %v506 = vpop.f32.mrf.mxu0
        %v507 = vadd.f32 0.0, %v506
        %v508 = vpop.f32.mrf.mxu0
        %v509 = vadd.f32 0.0, %v508
        %510 = vmatmul.bf16.gmra.mxu0 %v418
        %v511 = vpop.f32.mrf.mxu0
        %v512 = vadd.f32 0.0, %v511
        %v513 = vpop.f32.mrf.mxu0
        %v514 = vadd.f32 0.0, %v513
        %515 = vmatmul.bf16.gmra.mxu0 %v421
        %v516 = vpop.f32.mrf.mxu0
        %v517 = vadd.f32 0.0, %v516
        %v518 = vpop.f32.mrf.mxu0
        %v519 = vadd.f32 0.0, %v518
        %520 = vdwg.mxu0
        %521 = vmatpush.bf16.msra.mxu0 0
        %522 = vmatpush.bf16.msra.mxu0 0
        %523 = vmatpush.bf16.msra.mxu0 0
        %524 = vmatpush.bf16.msra.mxu0 0
        %525 = vmatpush.bf16.msra.mxu0 0
        %526 = vmatpush.bf16.msra.mxu0 0
        %527 = vmatpush.bf16.msra.mxu0 0
        %528 = vmatpush.bf16.msra.mxu0 %v352
        %529 = vmatmul.bf16.gmra.mxu0 %v400
        %v530 = vpop.f32.mrf.mxu0
        %v531 = vadd.f32 0.0, %v530
        %v532 = vpop.f32.mrf.mxu0
        %v533 = vadd.f32 0.0, %v532
        %534 = vmatmul.bf16.gmra.mxu0 %v403
        %v535 = vpop.f32.mrf.mxu0
        %v536 = vadd.f32 0.0, %v535
        %v537 = vpop.f32.mrf.mxu0
        %v538 = vadd.f32 0.0, %v537
        %539 = vmatmul.bf16.gmra.mxu0 %v406
        %v540 = vpop.f32.mrf.mxu0
        %v541 = vadd.f32 0.0, %v540
        %v542 = vpop.f32.mrf.mxu0
        %v543 = vadd.f32 0.0, %v542
        %544 = vmatmul.bf16.gmra.mxu0 %v409
        %v545 = vpop.f32.mrf.mxu0
        %v546 = vadd.f32 0.0, %v545
        %v547 = vpop.f32.mrf.mxu0
        %v548 = vadd.f32 0.0, %v547
        %549 = vmatmul.bf16.gmra.mxu0 %v412
        %v550 = vpop.f32.mrf.mxu0
        %v551 = vadd.f32 0.0, %v550
        %v552 = vpop.f32.mrf.mxu0
        %v553 = vadd.f32 0.0, %v552
        %554 = vmatmul.bf16.gmra.mxu0 %v415
        %v555 = vpop.f32.mrf.mxu0
        %v556 = vadd.f32 0.0, %v555
        %v557 = vpop.f32.mrf.mxu0
        %v558 = vadd.f32 0.0, %v557
        %559 = vmatmul.bf16.gmra.mxu0 %v418
        %v560 = vpop.f32.mrf.mxu0
        %v561 = vadd.f32 0.0, %v560
        %v562 = vpop.f32.mrf.mxu0
        %v563 = vadd.f32 0.0, %v562
        %564 = vmatmul.bf16.gmra.mxu0 %v421
        %v565 = vpop.f32.mrf.mxu0
        %v566 = vadd.f32 0.0, %v565
        %v567 = vpop.f32.mrf.mxu0
        %v568 = vadd.f32 0.0, %v567
        %569 = vdwg.mxu0
        %570 = vmatpush.bf16.msra.mxu0 0
        %571 = vmatpush.bf16.msra.mxu0 0
        %572 = vmatpush.bf16.msra.mxu0 0
        %573 = vmatpush.bf16.msra.mxu0 0
        %574 = vmatpush.bf16.msra.mxu0 0
        %575 = vmatpush.bf16.msra.mxu0 0
        %576 = vmatpush.bf16.msra.mxu0 0
        %577 = vmatpush.bf16.msra.mxu0 %v353
        %578 = vmatmul.bf16.gmra.mxu0 %v400
        %v579 = vpop.f32.mrf.mxu0
        %v580 = vadd.f32 0.0, %v579
        %v581 = vpop.f32.mrf.mxu0
        %v582 = vadd.f32 0.0, %v581
        %583 = vmatmul.bf16.gmra.mxu0 %v403
        %v584 = vpop.f32.mrf.mxu0
        %v585 = vadd.f32 0.0, %v584
        %v586 = vpop.f32.mrf.mxu0
        %v587 = vadd.f32 0.0, %v586
        %588 = vmatmul.bf16.gmra.mxu0 %v406
        %v589 = vpop.f32.mrf.mxu0
        %v590 = vadd.f32 0.0, %v589
        %v591 = vpop.f32.mrf.mxu0
        %v592 = vadd.f32 0.0, %v591
        %593 = vmatmul.bf16.gmra.mxu0 %v409
        %v594 = vpop.f32.mrf.mxu0
        %v595 = vadd.f32 0.0, %v594
        %v596 = vpop.f32.mrf.mxu0
        %v597 = vadd.f32 0.0, %v596
        %598 = vmatmul.bf16.gmra.mxu0 %v412
        %v599 = vpop.f32.mrf.mxu0
        %v600 = vadd.f32 0.0, %v599
        %v601 = vpop.f32.mrf.mxu0
        %v602 = vadd.f32 0.0, %v601
        %603 = vmatmul.bf16.gmra.mxu0 %v415
        %v604 = vpop.f32.mrf.mxu0
        %v605 = vadd.f32 0.0, %v604
        %v606 = vpop.f32.mrf.mxu0
        %v607 = vadd.f32 0.0, %v606
        %608 = vmatmul.bf16.gmra.mxu0 %v418
        %v609 = vpop.f32.mrf.mxu0
        %v610 = vadd.f32 0.0, %v609
        %v611 = vpop.f32.mrf.mxu0
        %v612 = vadd.f32 0.0, %v611
        %613 = vmatmul.bf16.gmra.mxu0 %v421
        %v614 = vpop.f32.mrf.mxu0
        %v615 = vadd.f32 0.0, %v614
        %v616 = vpop.f32.mrf.mxu0
        %v617 = vadd.f32 0.0, %v616
        %618 = vdwg.mxu0
        %619 = vmatpush.bf16.msra.mxu0 0
        %620 = vmatpush.bf16.msra.mxu0 0
        %621 = vmatpush.bf16.msra.mxu0 0
        %622 = vmatpush.bf16.msra.mxu0 0
        %623 = vmatpush.bf16.msra.mxu0 0
        %624 = vmatpush.bf16.msra.mxu0 0
        %625 = vmatpush.bf16.msra.mxu0 0
        %626 = vmatpush.bf16.msra.mxu0 %v354
        %627 = vmatmul.bf16.gmra.mxu0 %v400
        %v628 = vpop.f32.mrf.mxu0
        %v629 = vadd.f32 0.0, %v628
        %v630 = vpop.f32.mrf.mxu0
        %v631 = vadd.f32 0.0, %v630
        %632 = vmatmul.bf16.gmra.mxu0 %v403
        %v633 = vpop.f32.mrf.mxu0
        %v634 = vadd.f32 0.0, %v633
        %v635 = vpop.f32.mrf.mxu0
        %v636 = vadd.f32 0.0, %v635
        %637 = vmatmul.bf16.gmra.mxu0 %v406
        %v638 = vpop.f32.mrf.mxu0
        %v639 = vadd.f32 0.0, %v638
        %v640 = vpop.f32.mrf.mxu0
        %v641 = vadd.f32 0.0, %v640
        %642 = vmatmul.bf16.gmra.mxu0 %v409
        %v643 = vpop.f32.mrf.mxu0
        %v644 = vadd.f32 0.0, %v643
        %v645 = vpop.f32.mrf.mxu0
        %v646 = vadd.f32 0.0, %v645
        %647 = vmatmul.bf16.gmra.mxu0 %v412
        %v648 = vpop.f32.mrf.mxu0
        %v649 = vadd.f32 0.0, %v648
        %v650 = vpop.f32.mrf.mxu0
        %v651 = vadd.f32 0.0, %v650
        %652 = vmatmul.bf16.gmra.mxu0 %v415
        %v653 = vpop.f32.mrf.mxu0
        %v654 = vadd.f32 0.0, %v653
        %v655 = vpop.f32.mrf.mxu0
        %v656 = vadd.f32 0.0, %v655
        %657 = vmatmul.bf16.gmra.mxu0 %v418
        %v658 = vpop.f32.mrf.mxu0
        %v659 = vadd.f32 0.0, %v658
        %v660 = vpop.f32.mrf.mxu0
        %v661 = vadd.f32 0.0, %v660
        %662 = vmatmul.bf16.gmra.mxu0 %v421
        %v663 = vpop.f32.mrf.mxu0
        %v664 = vadd.f32 0.0, %v663
        %v665 = vpop.f32.mrf.mxu0
        %v666 = vadd.f32 0.0, %v665
        %667 = vdwg.mxu0
        %668 = vmatpush.bf16.msra.mxu0 0
        %669 = vmatpush.bf16.msra.mxu0 0
        %670 = vmatpush.bf16.msra.mxu0 0
        %671 = vmatpush.bf16.msra.mxu0 0
        %672 = vmatpush.bf16.msra.mxu0 0
        %673 = vmatpush.bf16.msra.mxu0 0
        %674 = vmatpush.bf16.msra.mxu0 0
        %675 = vmatpush.bf16.msra.mxu0 %v355
        %676 = vmatmul.bf16.gmra.mxu0 %v400
        %v677 = vpop.f32.mrf.mxu0
        %v678 = vadd.f32 0.0, %v677
        %v679 = vpop.f32.mrf.mxu0
        %v680 = vadd.f32 0.0, %v679
        %681 = vmatmul.bf16.gmra.mxu0 %v403
        %v682 = vpop.f32.mrf.mxu0
        %v683 = vadd.f32 0.0, %v682
        %v684 = vpop.f32.mrf.mxu0
        %v685 = vadd.f32 0.0, %v684
        %686 = vmatmul.bf16.gmra.mxu0 %v406
        %v687 = vpop.f32.mrf.mxu0
        %v688 = vadd.f32 0.0, %v687
        %v689 = vpop.f32.mrf.mxu0
        %v690 = vadd.f32 0.0, %v689
        %691 = vmatmul.bf16.gmra.mxu0 %v409
        %v692 = vpop.f32.mrf.mxu0
        %v693 = vadd.f32 0.0, %v692
        %v694 = vpop.f32.mrf.mxu0
        %v695 = vadd.f32 0.0, %v694
        %696 = vmatmul.bf16.gmra.mxu0 %v412
        %v697 = vpop.f32.mrf.mxu0
        %v698 = vadd.f32 0.0, %v697
        %v699 = vpop.f32.mrf.mxu0
        %v700 = vadd.f32 0.0, %v699
        %701 = vmatmul.bf16.gmra.mxu0 %v415
        %v702 = vpop.f32.mrf.mxu0
        %v703 = vadd.f32 0.0, %v702
        %v704 = vpop.f32.mrf.mxu0
        %v705 = vadd.f32 0.0, %v704
        %706 = vmatmul.bf16.gmra.mxu0 %v418
        %v707 = vpop.f32.mrf.mxu0
        %v708 = vadd.f32 0.0, %v707
        %v709 = vpop.f32.mrf.mxu0
        %v710 = vadd.f32 0.0, %v709
        %711 = vmatmul.bf16.gmra.mxu0 %v421
        %v712 = vpop.f32.mrf.mxu0
        %v713 = vadd.f32 0.0, %v712
        %v714 = vpop.f32.mrf.mxu0
        %v715 = vadd.f32 0.0, %v714
        %716 = vdwg.mxu0
        %717 = vmatpush.bf16.msra.mxu0 0
        %718 = vmatpush.bf16.msra.mxu0 0
        %719 = vmatpush.bf16.msra.mxu0 0
        %720 = vmatpush.bf16.msra.mxu0 0
        %721 = vmatpush.bf16.msra.mxu0 0
        %722 = vmatpush.bf16.msra.mxu0 0
        %723 = vmatpush.bf16.msra.mxu0 0
        %724 = vmatpush.bf16.msra.mxu0 %v356
        %725 = vmatmul.bf16.gmra.mxu0 %v400
        %v726 = vpop.f32.mrf.mxu0
        %v727 = vadd.f32 0.0, %v726
        %v728 = vpop.f32.mrf.mxu0
        %v729 = vadd.f32 0.0, %v728
        %730 = vmatmul.bf16.gmra.mxu0 %v403
        %v731 = vpop.f32.mrf.mxu0
        %v732 = vadd.f32 0.0, %v731
        %v733 = vpop.f32.mrf.mxu0
        %v734 = vadd.f32 0.0, %v733
        %735 = vmatmul.bf16.gmra.mxu0 %v406
        %v736 = vpop.f32.mrf.mxu0
        %v737 = vadd.f32 0.0, %v736
        %v738 = vpop.f32.mrf.mxu0
        %v739 = vadd.f32 0.0, %v738
        %740 = vmatmul.bf16.gmra.mxu0 %v409
        %v741 = vpop.f32.mrf.mxu0
        %v742 = vadd.f32 0.0, %v741
        %v743 = vpop.f32.mrf.mxu0
        %v744 = vadd.f32 0.0, %v743
        %745 = vmatmul.bf16.gmra.mxu0 %v412
        %v746 = vpop.f32.mrf.mxu0
        %v747 = vadd.f32 0.0, %v746
        %v748 = vpop.f32.mrf.mxu0
        %v749 = vadd.f32 0.0, %v748
        %750 = vmatmul.bf16.gmra.mxu0 %v415
        %v751 = vpop.f32.mrf.mxu0
        %v752 = vadd.f32 0.0, %v751
        %v753 = vpop.f32.mrf.mxu0
        %v754 = vadd.f32 0.0, %v753
        %755 = vmatmul.bf16.gmra.mxu0 %v418
        %v756 = vpop.f32.mrf.mxu0
        %v757 = vadd.f32 0.0, %v756
        %v758 = vpop.f32.mrf.mxu0
        %v759 = vadd.f32 0.0, %v758
        %760 = vmatmul.bf16.gmra.mxu0 %v421
        %v761 = vpop.f32.mrf.mxu0
        %v762 = vadd.f32 0.0, %v761
        %v763 = vpop.f32.mrf.mxu0
        %v764 = vadd.f32 0.0, %v763
        %765 = vdwg.mxu0
        %766 = vmatpush.bf16.msra.mxu0 0
        %767 = vmatpush.bf16.msra.mxu0 0
        %768 = vmatpush.bf16.msra.mxu0 0
        %769 = vmatpush.bf16.msra.mxu0 0
        %770 = vmatpush.bf16.msra.mxu0 0
        %771 = vmatpush.bf16.msra.mxu0 0
        %772 = vmatpush.bf16.msra.mxu0 0
        %773 = vmatpush.bf16.msra.mxu0 %v357
        %774 = vmatmul.bf16.gmra.mxu0 %v400
        %v775 = vpop.f32.mrf.mxu0
        %v776 = vadd.f32 0.0, %v775
        %v777 = vpop.f32.mrf.mxu0
        %v778 = vadd.f32 0.0, %v777
        %779 = vmatmul.bf16.gmra.mxu0 %v403
        %v780 = vpop.f32.mrf.mxu0
        %v781 = vadd.f32 0.0, %v780
        %v782 = vpop.f32.mrf.mxu0
        %v783 = vadd.f32 0.0, %v782
        %784 = vmatmul.bf16.gmra.mxu0 %v406
        %v785 = vpop.f32.mrf.mxu0
        %v786 = vadd.f32 0.0, %v785
        %v787 = vpop.f32.mrf.mxu0
        %v788 = vadd.f32 0.0, %v787
        %789 = vmatmul.bf16.gmra.mxu0 %v409
        %v790 = vpop.f32.mrf.mxu0
        %v791 = vadd.f32 0.0, %v790
        %v792 = vpop.f32.mrf.mxu0
        %v793 = vadd.f32 0.0, %v792
        %794 = vmatmul.bf16.gmra.mxu0 %v412
        %v795 = vpop.f32.mrf.mxu0
        %v796 = vadd.f32 0.0, %v795
        %v797 = vpop.f32.mrf.mxu0
        %v798 = vadd.f32 0.0, %v797
        %799 = vmatmul.bf16.gmra.mxu0 %v415
        %v800 = vpop.f32.mrf.mxu0
        %v801 = vadd.f32 0.0, %v800
        %v802 = vpop.f32.mrf.mxu0
        %v803 = vadd.f32 0.0, %v802
        %804 = vmatmul.bf16.gmra.mxu0 %v418
        %v805 = vpop.f32.mrf.mxu0
        %v806 = vadd.f32 0.0, %v805
        %v807 = vpop.f32.mrf.mxu0
        %v808 = vadd.f32 0.0, %v807
        %809 = vmatmul.bf16.gmra.mxu0 %v421
        %v810 = vpop.f32.mrf.mxu0
        %v811 = vadd.f32 0.0, %v810
        %v812 = vpop.f32.mrf.mxu0
        %v813 = vadd.f32 0.0, %v812
        %814 = vdwg.mxu0
        %v815 = vadd.s32 %v265, 16
        %v816 = vadd.s32 %v265, 24
        %v817 = vadd.s32 %v265, 32
        %v818 = vadd.s32 %v265, 40
        %v819 = vadd.s32 %v265, 48
        %v820 = vadd.s32 %v265, 56
        %v821 = vadd.s32 %v265, 64
        %v822 = vadd.s32 %v265, 72
        %v823 = vadd.s32 %v265, 80
        %v824 = vadd.s32 %v265, 88
        %v825 = vadd.s32 %v265, 96
        %v826 = vadd.s32 %v265, 104
        %v827 = vadd.s32 %v265, 112
        %v828 = vadd.s32 %v265, 120
        %v829 = vcvt.s32.f32 %v815
        %v830 = vcvt.s32.f32 %v816
        %v831 = vcvt.s32.f32 %v817
        %v832 = vcvt.s32.f32 %v818
        %v833 = vcvt.s32.f32 %v819
        %v834 = vcvt.s32.f32 %v820
        %v835 = vcvt.s32.f32 %v821
        %v836 = vcvt.s32.f32 %v822
        %v837 = vcvt.s32.f32 %v823
        %v838 = vcvt.s32.f32 %v824
        %v839 = vcvt.s32.f32 %v825
        %v840 = vcvt.s32.f32 %v826
        %v841 = vcvt.s32.f32 %v827
        %v842 = vcvt.s32.f32 %v828
        %v844 = vperm.slane %v247, 0
        %v845 = vperm.slane %v247, 1
        %v846 = vperm.slane %v247, 2
        %v847 = vperm.slane %v247, 3
        %v848 = vperm.slane %v247, 4
        %v849 = vperm.slane %v247, 5
        %v850 = vperm.slane %v247, 6
        %v851 = vperm.slane %v247, 7
        %v860 = vsub.f32 %v844, %v267
        %v861 = vsub.f32 %v845, %v267
        %v862 = vsub.f32 %v846, %v267
        %v863 = vsub.f32 %v847, %v267
        %v864 = vsub.f32 %v848, %v267
        %v865 = vsub.f32 %v849, %v267
        %v866 = vsub.f32 %v850, %v267
        %v867 = vsub.f32 %v851, %v267
        %v868 = vsub.f32 %v844, %v268
        %v869 = vsub.f32 %v845, %v268
        %v870 = vsub.f32 %v846, %v268
        %v871 = vsub.f32 %v847, %v268
        %v872 = vsub.f32 %v848, %v268
        %v873 = vsub.f32 %v849, %v268
        %v874 = vsub.f32 %v850, %v268
        %v875 = vsub.f32 %v851, %v268
        %v876 = vsub.f32 %v844, %v829
        %v877 = vsub.f32 %v845, %v829
        %v878 = vsub.f32 %v846, %v829
        %v879 = vsub.f32 %v847, %v829
        %v880 = vsub.f32 %v848, %v829
        %v881 = vsub.f32 %v849, %v829
        %v882 = vsub.f32 %v850, %v829
        %v883 = vsub.f32 %v851, %v829
        %v884 = vsub.f32 %v844, %v830
        %v885 = vsub.f32 %v845, %v830
        %v886 = vsub.f32 %v846, %v830
        %v887 = vsub.f32 %v847, %v830
        %v888 = vsub.f32 %v848, %v830
        %v889 = vsub.f32 %v849, %v830
        %v890 = vsub.f32 %v850, %v830
        %v891 = vsub.f32 %v851, %v830
        %v892 = vsub.f32 %v844, %v831
        %v893 = vsub.f32 %v845, %v831
        %v894 = vsub.f32 %v846, %v831
        %v895 = vsub.f32 %v847, %v831
        %v896 = vsub.f32 %v848, %v831
        %v897 = vsub.f32 %v849, %v831
        %v898 = vsub.f32 %v850, %v831
        %v899 = vsub.f32 %v851, %v831
        %v900 = vsub.f32 %v844, %v832
        %v901 = vsub.f32 %v845, %v832
        %v902 = vsub.f32 %v846, %v832
        %v903 = vsub.f32 %v847, %v832
        %v904 = vsub.f32 %v848, %v832
        %v905 = vsub.f32 %v849, %v832
        %v906 = vsub.f32 %v850, %v832
        %v907 = vsub.f32 %v851, %v832
        %v908 = vsub.f32 %v844, %v833
        %v909 = vsub.f32 %v845, %v833
        %v910 = vsub.f32 %v846, %v833
        %v911 = vsub.f32 %v847, %v833
        %v912 = vsub.f32 %v848, %v833
        %v913 = vsub.f32 %v849, %v833
        %v914 = vsub.f32 %v850, %v833
        %v915 = vsub.f32 %v851, %v833
        %v916 = vsub.f32 %v844, %v834
        %v917 = vsub.f32 %v845, %v834
        %v918 = vsub.f32 %v846, %v834
        %v919 = vsub.f32 %v847, %v834
        %v920 = vsub.f32 %v848, %v834
        %v921 = vsub.f32 %v849, %v834
        %v922 = vsub.f32 %v850, %v834
        %v923 = vsub.f32 %v851, %v834
        %v924 = vsub.f32 %v844, %v835
        %v925 = vsub.f32 %v845, %v835
        %v926 = vsub.f32 %v846, %v835
        %v927 = vsub.f32 %v847, %v835
        %v928 = vsub.f32 %v848, %v835
        %v929 = vsub.f32 %v849, %v835
        %v930 = vsub.f32 %v850, %v835
        %v931 = vsub.f32 %v851, %v835
        %v932 = vsub.f32 %v844, %v836
        %v933 = vsub.f32 %v845, %v836
        %v934 = vsub.f32 %v846, %v836
        %v935 = vsub.f32 %v847, %v836
        %v936 = vsub.f32 %v848, %v836
        %v937 = vsub.f32 %v849, %v836
        %v938 = vsub.f32 %v850, %v836
        %v939 = vsub.f32 %v851, %v836
        %v940 = vsub.f32 %v844, %v837
        %v941 = vsub.f32 %v845, %v837
        %v942 = vsub.f32 %v846, %v837
        %v943 = vsub.f32 %v847, %v837
        %v944 = vsub.f32 %v848, %v837
        %v945 = vsub.f32 %v849, %v837
        %v946 = vsub.f32 %v850, %v837
        %v947 = vsub.f32 %v851, %v837
        %v948 = vsub.f32 %v844, %v838
        %v949 = vsub.f32 %v845, %v838
        %v950 = vsub.f32 %v846, %v838
        %v951 = vsub.f32 %v847, %v838
        %v952 = vsub.f32 %v848, %v838
        %v953 = vsub.f32 %v849, %v838
        %v954 = vsub.f32 %v850, %v838
        %v955 = vsub.f32 %v851, %v838
        %v956 = vsub.f32 %v844, %v839
        %v957 = vsub.f32 %v845, %v839
        %v958 = vsub.f32 %v846, %v839
        %v959 = vsub.f32 %v847, %v839
        %v960 = vsub.f32 %v848, %v839
        %v961 = vsub.f32 %v849, %v839
        %v962 = vsub.f32 %v850, %v839
        %v963 = vsub.f32 %v851, %v839
        %v964 = vsub.f32 %v844, %v840
        %v965 = vsub.f32 %v845, %v840
        %v966 = vsub.f32 %v846, %v840
        %v967 = vsub.f32 %v847, %v840
        %v968 = vsub.f32 %v848, %v840
        %v969 = vsub.f32 %v849, %v840
        %v970 = vsub.f32 %v850, %v840
        %v971 = vsub.f32 %v851, %v840
        %v972 = vsub.f32 %v844, %v841
        %v973 = vsub.f32 %v845, %v841
        %v974 = vsub.f32 %v846, %v841
        %v975 = vsub.f32 %v847, %v841
        %v976 = vsub.f32 %v848, %v841
        %v977 = vsub.f32 %v849, %v841
        %v978 = vsub.f32 %v850, %v841
        %v979 = vsub.f32 %v851, %v841
        %v980 = vsub.f32 %v844, %v842
        %v981 = vsub.f32 %v845, %v842
        %v982 = vsub.f32 %v846, %v842
        %v983 = vsub.f32 %v847, %v842
        %v984 = vsub.f32 %v848, %v842
        %v985 = vsub.f32 %v849, %v842
        %v986 = vsub.f32 %v850, %v842
        %v987 = vsub.f32 %v851, %v842
        %v988 = vand.u32 2147483647, %v860
        %v989 = vand.u32 2147483647, %v861
        %v990 = vand.u32 2147483647, %v862
        %v991 = vand.u32 2147483647, %v863
        %v992 = vand.u32 2147483647, %v864
        %v993 = vand.u32 2147483647, %v865
        %v994 = vand.u32 2147483647, %v866
        %v995 = vand.u32 2147483647, %v867
        %v996 = vand.u32 2147483647, %v868
        %v997 = vand.u32 2147483647, %v869
        %v998 = vand.u32 2147483647, %v870
        %v999 = vand.u32 2147483647, %v871
        %v1000 = vand.u32 2147483647, %v872
        %v1001 = vand.u32 2147483647, %v873
        %v1002 = vand.u32 2147483647, %v874
        %v1003 = vand.u32 2147483647, %v875
        %v1004 = vand.u32 2147483647, %v876
        %v1005 = vand.u32 2147483647, %v877
        %v1006 = vand.u32 2147483647, %v878
        %v1007 = vand.u32 2147483647, %v879
        %v1008 = vand.u32 2147483647, %v880
        %v1009 = vand.u32 2147483647, %v881
        %v1010 = vand.u32 2147483647, %v882
        %v1011 = vand.u32 2147483647, %v883
        %v1012 = vand.u32 2147483647, %v884
        %v1013 = vand.u32 2147483647, %v885
        %v1014 = vand.u32 2147483647, %v886
        %v1015 = vand.u32 2147483647, %v887
        %v1016 = vand.u32 2147483647, %v888
        %v1017 = vand.u32 2147483647, %v889
        %v1018 = vand.u32 2147483647, %v890
        %v1019 = vand.u32 2147483647, %v891
        %v1020 = vand.u32 2147483647, %v892
        %v1021 = vand.u32 2147483647, %v893
        %v1022 = vand.u32 2147483647, %v894
        %v1023 = vand.u32 2147483647, %v895
        %v1024 = vand.u32 2147483647, %v896
        %v1025 = vand.u32 2147483647, %v897
        %v1026 = vand.u32 2147483647, %v898
        %v1027 = vand.u32 2147483647, %v899
        %v1028 = vand.u32 2147483647, %v900
        %v1029 = vand.u32 2147483647, %v901
        %v1030 = vand.u32 2147483647, %v902
        %v1031 = vand.u32 2147483647, %v903
        %v1032 = vand.u32 2147483647, %v904
        %v1033 = vand.u32 2147483647, %v905
        %v1034 = vand.u32 2147483647, %v906
        %v1035 = vand.u32 2147483647, %v907
        %v1036 = vand.u32 2147483647, %v908
        %v1037 = vand.u32 2147483647, %v909
        %v1038 = vand.u32 2147483647, %v910
        %v1039 = vand.u32 2147483647, %v911
        %v1040 = vand.u32 2147483647, %v912
        %v1041 = vand.u32 2147483647, %v913
        %v1042 = vand.u32 2147483647, %v914
        %v1043 = vand.u32 2147483647, %v915
        %v1044 = vand.u32 2147483647, %v916
        %v1045 = vand.u32 2147483647, %v917
        %v1046 = vand.u32 2147483647, %v918
        %v1047 = vand.u32 2147483647, %v919
        %v1048 = vand.u32 2147483647, %v920
        %v1049 = vand.u32 2147483647, %v921
        %v1050 = vand.u32 2147483647, %v922
        %v1051 = vand.u32 2147483647, %v923
        %v1052 = vand.u32 2147483647, %v924
        %v1053 = vand.u32 2147483647, %v925
        %v1054 = vand.u32 2147483647, %v926
        %v1055 = vand.u32 2147483647, %v927
        %v1056 = vand.u32 2147483647, %v928
        %v1057 = vand.u32 2147483647, %v929
        %v1058 = vand.u32 2147483647, %v930
        %v1059 = vand.u32 2147483647, %v931
        %v1060 = vand.u32 2147483647, %v932
        %v1061 = vand.u32 2147483647, %v933
        %v1062 = vand.u32 2147483647, %v934
        %v1063 = vand.u32 2147483647, %v935
        %v1064 = vand.u32 2147483647, %v936
        %v1065 = vand.u32 2147483647, %v937
        %v1066 = vand.u32 2147483647, %v938
        %v1067 = vand.u32 2147483647, %v939
        %v1068 = vand.u32 2147483647, %v940
        %v1069 = vand.u32 2147483647, %v941
        %v1070 = vand.u32 2147483647, %v942
        %v1071 = vand.u32 2147483647, %v943
        %v1072 = vand.u32 2147483647, %v944
        %v1073 = vand.u32 2147483647, %v945
        %v1074 = vand.u32 2147483647, %v946
        %v1075 = vand.u32 2147483647, %v947
        %v1076 = vand.u32 2147483647, %v948
        %v1077 = vand.u32 2147483647, %v949
        %v1078 = vand.u32 2147483647, %v950
        %v1079 = vand.u32 2147483647, %v951
        %v1080 = vand.u32 2147483647, %v952
        %v1081 = vand.u32 2147483647, %v953
        %v1082 = vand.u32 2147483647, %v954
        %v1083 = vand.u32 2147483647, %v955
        %v1084 = vand.u32 2147483647, %v956
        %v1085 = vand.u32 2147483647, %v957
        %v1086 = vand.u32 2147483647, %v958
        %v1087 = vand.u32 2147483647, %v959
        %v1088 = vand.u32 2147483647, %v960
        %v1089 = vand.u32 2147483647, %v961
        %v1090 = vand.u32 2147483647, %v962
        %v1091 = vand.u32 2147483647, %v963
        %v1092 = vand.u32 2147483647, %v964
        %v1093 = vand.u32 2147483647, %v965
        %v1094 = vand.u32 2147483647, %v966
        %v1095 = vand.u32 2147483647, %v967
        %v1096 = vand.u32 2147483647, %v968
        %v1097 = vand.u32 2147483647, %v969
        %v1098 = vand.u32 2147483647, %v970
        %v1099 = vand.u32 2147483647, %v971
        %v1100 = vand.u32 2147483647, %v972
        %v1101 = vand.u32 2147483647, %v973
        %v1102 = vand.u32 2147483647, %v974
        %v1103 = vand.u32 2147483647, %v975
        %v1104 = vand.u32 2147483647, %v976
        %v1105 = vand.u32 2147483647, %v977
        %v1106 = vand.u32 2147483647, %v978
        %v1107 = vand.u32 2147483647, %v979
        %v1108 = vand.u32 2147483647, %v980
        %v1109 = vand.u32 2147483647, %v981
        %v1110 = vand.u32 2147483647, %v982
        %v1111 = vand.u32 2147483647, %v983
        %v1112 = vand.u32 2147483647, %v984
        %v1113 = vand.u32 2147483647, %v985
        %v1114 = vand.u32 2147483647, %v986
        %v1115 = vand.u32 2147483647, %v987
        %v1116 = vsub.f32 1.0, %v988
        %v1117 = vsub.f32 1.0, %v989
        %v1118 = vsub.f32 1.0, %v990
        %v1119 = vsub.f32 1.0, %v991
        %v1120 = vsub.f32 1.0, %v992
        %v1121 = vsub.f32 1.0, %v993
        %v1122 = vsub.f32 1.0, %v994
        %v1123 = vsub.f32 1.0, %v995
        %v1124 = vsub.f32 1.0, %v996
        %v1125 = vsub.f32 1.0, %v997
        %v1126 = vsub.f32 1.0, %v998
        %v1127 = vsub.f32 1.0, %v999
        %v1128 = vsub.f32 1.0, %v1000
        %v1129 = vsub.f32 1.0, %v1001
        %v1130 = vsub.f32 1.0, %v1002
        %v1131 = vsub.f32 1.0, %v1003
        %v1132 = vsub.f32 1.0, %v1004
        %v1133 = vsub.f32 1.0, %v1005
        %v1134 = vsub.f32 1.0, %v1006
        %v1135 = vsub.f32 1.0, %v1007
        %v1136 = vsub.f32 1.0, %v1008
        %v1137 = vsub.f32 1.0, %v1009
        %v1138 = vsub.f32 1.0, %v1010
        %v1139 = vsub.f32 1.0, %v1011
        %v1140 = vsub.f32 1.0, %v1012
        %v1141 = vsub.f32 1.0, %v1013
        %v1142 = vsub.f32 1.0, %v1014
        %v1143 = vsub.f32 1.0, %v1015
        %v1144 = vsub.f32 1.0, %v1016
        %v1145 = vsub.f32 1.0, %v1017
        %v1146 = vsub.f32 1.0, %v1018
        %v1147 = vsub.f32 1.0, %v1019
        %v1148 = vsub.f32 1.0, %v1020
        %v1149 = vsub.f32 1.0, %v1021
        %v1150 = vsub.f32 1.0, %v1022
        %v1151 = vsub.f32 1.0, %v1023
        %v1152 = vsub.f32 1.0, %v1024
        %v1153 = vsub.f32 1.0, %v1025
        %v1154 = vsub.f32 1.0, %v1026
        %v1155 = vsub.f32 1.0, %v1027
        %v1156 = vsub.f32 1.0, %v1028
        %v1157 = vsub.f32 1.0, %v1029
        %v1158 = vsub.f32 1.0, %v1030
        %v1159 = vsub.f32 1.0, %v1031
        %v1160 = vsub.f32 1.0, %v1032
        %v1161 = vsub.f32 1.0, %v1033
        %v1162 = vsub.f32 1.0, %v1034
        %v1163 = vsub.f32 1.0, %v1035
        %v1164 = vsub.f32 1.0, %v1036
        %v1165 = vsub.f32 1.0, %v1037
        %v1166 = vsub.f32 1.0, %v1038
        %v1167 = vsub.f32 1.0, %v1039
        %v1168 = vsub.f32 1.0, %v1040
        %v1169 = vsub.f32 1.0, %v1041
        %v1170 = vsub.f32 1.0, %v1042
        %v1171 = vsub.f32 1.0, %v1043
        %v1172 = vsub.f32 1.0, %v1044
        %v1173 = vsub.f32 1.0, %v1045
        %v1174 = vsub.f32 1.0, %v1046
        %v1175 = vsub.f32 1.0, %v1047
        %v1176 = vsub.f32 1.0, %v1048
        %v1177 = vsub.f32 1.0, %v1049
        %v1178 = vsub.f32 1.0, %v1050
        %v1179 = vsub.f32 1.0, %v1051
        %v1180 = vsub.f32 1.0, %v1052
        %v1181 = vsub.f32 1.0, %v1053
        %v1182 = vsub.f32 1.0, %v1054
        %v1183 = vsub.f32 1.0, %v1055
        %v1184 = vsub.f32 1.0, %v1056
        %v1185 = vsub.f32 1.0, %v1057
        %v1186 = vsub.f32 1.0, %v1058
        %v1187 = vsub.f32 1.0, %v1059
        %v1188 = vsub.f32 1.0, %v1060
        %v1189 = vsub.f32 1.0, %v1061
        %v1190 = vsub.f32 1.0, %v1062
        %v1191 = vsub.f32 1.0, %v1063
        %v1192 = vsub.f32 1.0, %v1064
        %v1193 = vsub.f32 1.0, %v1065
        %v1194 = vsub.f32 1.0, %v1066
        %v1195 = vsub.f32 1.0, %v1067
        %v1196 = vsub.f32 1.0, %v1068
        %v1197 = vsub.f32 1.0, %v1069
        %v1198 = vsub.f32 1.0, %v1070
        %v1199 = vsub.f32 1.0, %v1071
        %v1200 = vsub.f32 1.0, %v1072
        %v1201 = vsub.f32 1.0, %v1073
        %v1202 = vsub.f32 1.0, %v1074
        %v1203 = vsub.f32 1.0, %v1075
        %v1204 = vsub.f32 1.0, %v1076
        %v1205 = vsub.f32 1.0, %v1077
        %v1206 = vsub.f32 1.0, %v1078
        %v1207 = vsub.f32 1.0, %v1079
        %v1208 = vsub.f32 1.0, %v1080
        %v1209 = vsub.f32 1.0, %v1081
        %v1210 = vsub.f32 1.0, %v1082
        %v1211 = vsub.f32 1.0, %v1083
        %v1212 = vsub.f32 1.0, %v1084
        %v1213 = vsub.f32 1.0, %v1085
        %v1214 = vsub.f32 1.0, %v1086
        %v1215 = vsub.f32 1.0, %v1087
        %v1216 = vsub.f32 1.0, %v1088
        %v1217 = vsub.f32 1.0, %v1089
        %v1218 = vsub.f32 1.0, %v1090
        %v1219 = vsub.f32 1.0, %v1091
        %v1220 = vsub.f32 1.0, %v1092
        %v1221 = vsub.f32 1.0, %v1093
        %v1222 = vsub.f32 1.0, %v1094
        %v1223 = vsub.f32 1.0, %v1095
        %v1224 = vsub.f32 1.0, %v1096
        %v1225 = vsub.f32 1.0, %v1097
        %v1226 = vsub.f32 1.0, %v1098
        %v1227 = vsub.f32 1.0, %v1099
        %v1228 = vsub.f32 1.0, %v1100
        %v1229 = vsub.f32 1.0, %v1101
        %v1230 = vsub.f32 1.0, %v1102
        %v1231 = vsub.f32 1.0, %v1103
        %v1232 = vsub.f32 1.0, %v1104
        %v1233 = vsub.f32 1.0, %v1105
        %v1234 = vsub.f32 1.0, %v1106
        %v1235 = vsub.f32 1.0, %v1107
        %v1236 = vsub.f32 1.0, %v1108
        %v1237 = vsub.f32 1.0, %v1109
        %v1238 = vsub.f32 1.0, %v1110
        %v1239 = vsub.f32 1.0, %v1111
        %v1240 = vsub.f32 1.0, %v1112
        %v1241 = vsub.f32 1.0, %v1113
        %v1242 = vsub.f32 1.0, %v1114
        %v1243 = vsub.f32 1.0, %v1115
        %v1244 = vmax.f32 %v1116, 0.0
        %v1245 = vmax.f32 %v1117, 0.0
        %v1246 = vmax.f32 %v1118, 0.0
        %v1247 = vmax.f32 %v1119, 0.0
        %v1248 = vmax.f32 %v1120, 0.0
        %v1249 = vmax.f32 %v1121, 0.0
        %v1250 = vmax.f32 %v1122, 0.0
        %v1251 = vmax.f32 %v1123, 0.0
        %v1252 = vmax.f32 %v1124, 0.0
        %v1253 = vmax.f32 %v1125, 0.0
        %v1254 = vmax.f32 %v1126, 0.0
        %v1255 = vmax.f32 %v1127, 0.0
        %v1256 = vmax.f32 %v1128, 0.0
        %v1257 = vmax.f32 %v1129, 0.0
        %v1258 = vmax.f32 %v1130, 0.0
        %v1259 = vmax.f32 %v1131, 0.0
        %v1260 = vmax.f32 %v1132, 0.0
        %v1261 = vmax.f32 %v1133, 0.0
        %v1262 = vmax.f32 %v1134, 0.0
        %v1263 = vmax.f32 %v1135, 0.0
        %v1264 = vmax.f32 %v1136, 0.0
        %v1265 = vmax.f32 %v1137, 0.0
        %v1266 = vmax.f32 %v1138, 0.0
        %v1267 = vmax.f32 %v1139, 0.0
        %v1268 = vmax.f32 %v1140, 0.0
        %v1269 = vmax.f32 %v1141, 0.0
        %v1270 = vmax.f32 %v1142, 0.0
        %v1271 = vmax.f32 %v1143, 0.0
        %v1272 = vmax.f32 %v1144, 0.0
        %v1273 = vmax.f32 %v1145, 0.0
        %v1274 = vmax.f32 %v1146, 0.0
        %v1275 = vmax.f32 %v1147, 0.0
        %v1276 = vmax.f32 %v1148, 0.0
        %v1277 = vmax.f32 %v1149, 0.0
        %v1278 = vmax.f32 %v1150, 0.0
        %v1279 = vmax.f32 %v1151, 0.0
        %v1280 = vmax.f32 %v1152, 0.0
        %v1281 = vmax.f32 %v1153, 0.0
        %v1282 = vmax.f32 %v1154, 0.0
        %v1283 = vmax.f32 %v1155, 0.0
        %v1284 = vmax.f32 %v1156, 0.0
        %v1285 = vmax.f32 %v1157, 0.0
        %v1286 = vmax.f32 %v1158, 0.0
        %v1287 = vmax.f32 %v1159, 0.0
        %v1288 = vmax.f32 %v1160, 0.0
        %v1289 = vmax.f32 %v1161, 0.0
        %v1290 = vmax.f32 %v1162, 0.0
        %v1291 = vmax.f32 %v1163, 0.0
        %v1292 = vmax.f32 %v1164, 0.0
        %v1293 = vmax.f32 %v1165, 0.0
        %v1294 = vmax.f32 %v1166, 0.0
        %v1295 = vmax.f32 %v1167, 0.0
        %v1296 = vmax.f32 %v1168, 0.0
        %v1297 = vmax.f32 %v1169, 0.0
        %v1298 = vmax.f32 %v1170, 0.0
        %v1299 = vmax.f32 %v1171, 0.0
        %v1300 = vmax.f32 %v1172, 0.0
        %v1301 = vmax.f32 %v1173, 0.0
        %v1302 = vmax.f32 %v1174, 0.0
        %v1303 = vmax.f32 %v1175, 0.0
        %v1304 = vmax.f32 %v1176, 0.0
        %v1305 = vmax.f32 %v1177, 0.0
        %v1306 = vmax.f32 %v1178, 0.0
        %v1307 = vmax.f32 %v1179, 0.0
        %v1308 = vmax.f32 %v1180, 0.0
        %v1309 = vmax.f32 %v1181, 0.0
        %v1310 = vmax.f32 %v1182, 0.0
        %v1311 = vmax.f32 %v1183, 0.0
        %v1312 = vmax.f32 %v1184, 0.0
        %v1313 = vmax.f32 %v1185, 0.0
        %v1314 = vmax.f32 %v1186, 0.0
        %v1315 = vmax.f32 %v1187, 0.0
        %v1316 = vmax.f32 %v1188, 0.0
        %v1317 = vmax.f32 %v1189, 0.0
        %v1318 = vmax.f32 %v1190, 0.0
        %v1319 = vmax.f32 %v1191, 0.0
        %v1320 = vmax.f32 %v1192, 0.0
        %v1321 = vmax.f32 %v1193, 0.0
        %v1322 = vmax.f32 %v1194, 0.0
        %v1323 = vmax.f32 %v1195, 0.0
        %v1324 = vmax.f32 %v1196, 0.0
        %v1325 = vmax.f32 %v1197, 0.0
        %v1326 = vmax.f32 %v1198, 0.0
        %v1327 = vmax.f32 %v1199, 0.0
        %v1328 = vmax.f32 %v1200, 0.0
        %v1329 = vmax.f32 %v1201, 0.0
        %v1330 = vmax.f32 %v1202, 0.0
        %v1331 = vmax.f32 %v1203, 0.0
        %v1332 = vmax.f32 %v1204, 0.0
        %v1333 = vmax.f32 %v1205, 0.0
        %v1334 = vmax.f32 %v1206, 0.0
        %v1335 = vmax.f32 %v1207, 0.0
        %v1336 = vmax.f32 %v1208, 0.0
        %v1337 = vmax.f32 %v1209, 0.0
        %v1338 = vmax.f32 %v1210, 0.0
        %v1339 = vmax.f32 %v1211, 0.0
        %v1340 = vmax.f32 %v1212, 0.0
        %v1341 = vmax.f32 %v1213, 0.0
        %v1342 = vmax.f32 %v1214, 0.0
        %v1343 = vmax.f32 %v1215, 0.0
        %v1344 = vmax.f32 %v1216, 0.0
        %v1345 = vmax.f32 %v1217, 0.0
        %v1346 = vmax.f32 %v1218, 0.0
        %v1347 = vmax.f32 %v1219, 0.0
        %v1348 = vmax.f32 %v1220, 0.0
        %v1349 = vmax.f32 %v1221, 0.0
        %v1350 = vmax.f32 %v1222, 0.0
        %v1351 = vmax.f32 %v1223, 0.0
        %v1352 = vmax.f32 %v1224, 0.0
        %v1353 = vmax.f32 %v1225, 0.0
        %v1354 = vmax.f32 %v1226, 0.0
        %v1355 = vmax.f32 %v1227, 0.0
        %v1356 = vmax.f32 %v1228, 0.0
        %v1357 = vmax.f32 %v1229, 0.0
        %v1358 = vmax.f32 %v1230, 0.0
        %v1359 = vmax.f32 %v1231, 0.0
        %v1360 = vmax.f32 %v1232, 0.0
        %v1361 = vmax.f32 %v1233, 0.0
        %v1362 = vmax.f32 %v1234, 0.0
        %v1363 = vmax.f32 %v1235, 0.0
        %v1364 = vmax.f32 %v1236, 0.0
        %v1365 = vmax.f32 %v1237, 0.0
        %v1366 = vmax.f32 %v1238, 0.0
        %v1367 = vmax.f32 %v1239, 0.0
        %v1368 = vmax.f32 %v1240, 0.0
        %v1369 = vmax.f32 %v1241, 0.0
        %v1370 = vmax.f32 %v1242, 0.0
        %v1371 = vmax.f32 %v1243, 0.0
        %v1372 = vmul.f32 %v433, %v1244
        %v1373 = vmul.f32 %v482, %v1245
        %v1374 = vmul.f32 %v531, %v1246
        %v1375 = vmul.f32 %v580, %v1247
        %v1376 = vmul.f32 %v629, %v1248
        %v1377 = vmul.f32 %v678, %v1249
        %v1378 = vmul.f32 %v727, %v1250
        %v1379 = vmul.f32 %v776, %v1251
        %v1380 = vmul.f32 %v435, %v1252
        %v1381 = vmul.f32 %v484, %v1253
        %v1382 = vmul.f32 %v533, %v1254
        %v1383 = vmul.f32 %v582, %v1255
        %v1384 = vmul.f32 %v631, %v1256
        %v1385 = vmul.f32 %v680, %v1257
        %v1386 = vmul.f32 %v729, %v1258
        %v1387 = vmul.f32 %v778, %v1259
        %v1388 = vmul.f32 %v438, %v1260
        %v1389 = vmul.f32 %v487, %v1261
        %v1390 = vmul.f32 %v536, %v1262
        %v1391 = vmul.f32 %v585, %v1263
        %v1392 = vmul.f32 %v634, %v1264
        %v1393 = vmul.f32 %v683, %v1265
        %v1394 = vmul.f32 %v732, %v1266
        %v1395 = vmul.f32 %v781, %v1267
        %v1396 = vmul.f32 %v440, %v1268
        %v1397 = vmul.f32 %v489, %v1269
        %v1398 = vmul.f32 %v538, %v1270
        %v1399 = vmul.f32 %v587, %v1271
        %v1400 = vmul.f32 %v636, %v1272
        %v1401 = vmul.f32 %v685, %v1273
        %v1402 = vmul.f32 %v734, %v1274
        %v1403 = vmul.f32 %v783, %v1275
        %v1404 = vmul.f32 %v443, %v1276
        %v1405 = vmul.f32 %v492, %v1277
        %v1406 = vmul.f32 %v541, %v1278
        %v1407 = vmul.f32 %v590, %v1279
        %v1408 = vmul.f32 %v639, %v1280
        %v1409 = vmul.f32 %v688, %v1281
        %v1410 = vmul.f32 %v737, %v1282
        %v1411 = vmul.f32 %v786, %v1283
        %v1412 = vmul.f32 %v445, %v1284
        %v1413 = vmul.f32 %v494, %v1285
        %v1414 = vmul.f32 %v543, %v1286
        %v1415 = vmul.f32 %v592, %v1287
        %v1416 = vmul.f32 %v641, %v1288
        %v1417 = vmul.f32 %v690, %v1289
        %v1418 = vmul.f32 %v739, %v1290
        %v1419 = vmul.f32 %v788, %v1291
        %v1420 = vmul.f32 %v448, %v1292
        %v1421 = vmul.f32 %v497, %v1293
        %v1422 = vmul.f32 %v546, %v1294
        %v1423 = vmul.f32 %v595, %v1295
        %v1424 = vmul.f32 %v644, %v1296
        %v1425 = vmul.f32 %v693, %v1297
        %v1426 = vmul.f32 %v742, %v1298
        %v1427 = vmul.f32 %v791, %v1299
        %v1428 = vmul.f32 %v450, %v1300
        %v1429 = vmul.f32 %v499, %v1301
        %v1430 = vmul.f32 %v548, %v1302
        %v1431 = vmul.f32 %v597, %v1303
        %v1432 = vmul.f32 %v646, %v1304
        %v1433 = vmul.f32 %v695, %v1305
        %v1434 = vmul.f32 %v744, %v1306
        %v1435 = vmul.f32 %v793, %v1307
        %v1436 = vmul.f32 %v453, %v1308
        %v1437 = vmul.f32 %v502, %v1309
        %v1438 = vmul.f32 %v551, %v1310
        %v1439 = vmul.f32 %v600, %v1311
        %v1440 = vmul.f32 %v649, %v1312
        %v1441 = vmul.f32 %v698, %v1313
        %v1442 = vmul.f32 %v747, %v1314
        %v1443 = vmul.f32 %v796, %v1315
        %v1444 = vmul.f32 %v455, %v1316
        %v1445 = vmul.f32 %v504, %v1317
        %v1446 = vmul.f32 %v553, %v1318
        %v1447 = vmul.f32 %v602, %v1319
        %v1448 = vmul.f32 %v651, %v1320
        %v1449 = vmul.f32 %v700, %v1321
        %v1450 = vmul.f32 %v749, %v1322
        %v1451 = vmul.f32 %v798, %v1323
        %v1452 = vmul.f32 %v458, %v1324
        %v1453 = vmul.f32 %v507, %v1325
        %v1454 = vmul.f32 %v556, %v1326
        %v1455 = vmul.f32 %v605, %v1327
        %v1456 = vmul.f32 %v654, %v1328
        %v1457 = vmul.f32 %v703, %v1329
        %v1458 = vmul.f32 %v752, %v1330
        %v1459 = vmul.f32 %v801, %v1331
        %v1460 = vmul.f32 %v460, %v1332
        %v1461 = vmul.f32 %v509, %v1333
        %v1462 = vmul.f32 %v558, %v1334
        %v1463 = vmul.f32 %v607, %v1335
        %v1464 = vmul.f32 %v656, %v1336
        %v1465 = vmul.f32 %v705, %v1337
        %v1466 = vmul.f32 %v754, %v1338
        %v1467 = vmul.f32 %v803, %v1339
        %v1468 = vmul.f32 %v463, %v1340
        %v1469 = vmul.f32 %v512, %v1341
        %v1470 = vmul.f32 %v561, %v1342
        %v1471 = vmul.f32 %v610, %v1343
        %v1472 = vmul.f32 %v659, %v1344
        %v1473 = vmul.f32 %v708, %v1345
        %v1474 = vmul.f32 %v757, %v1346
        %v1475 = vmul.f32 %v806, %v1347
        %v1476 = vmul.f32 %v465, %v1348
        %v1477 = vmul.f32 %v514, %v1349
        %v1478 = vmul.f32 %v563, %v1350
        %v1479 = vmul.f32 %v612, %v1351
        %v1480 = vmul.f32 %v661, %v1352
        %v1481 = vmul.f32 %v710, %v1353
        %v1482 = vmul.f32 %v759, %v1354
        %v1483 = vmul.f32 %v808, %v1355
        %v1484 = vmul.f32 %v468, %v1356
        %v1485 = vmul.f32 %v517, %v1357
        %v1486 = vmul.f32 %v566, %v1358
        %v1487 = vmul.f32 %v615, %v1359
        %v1488 = vmul.f32 %v664, %v1360
        %v1489 = vmul.f32 %v713, %v1361
        %v1490 = vmul.f32 %v762, %v1362
        %v1491 = vmul.f32 %v811, %v1363
        %v1492 = vmul.f32 %v470, %v1364
        %v1493 = vmul.f32 %v519, %v1365
        %v1494 = vmul.f32 %v568, %v1366
        %v1495 = vmul.f32 %v617, %v1367
        %v1496 = vmul.f32 %v666, %v1368
        %v1497 = vmul.f32 %v715, %v1369
        %v1498 = vmul.f32 %v764, %v1370
        %v1499 = vmul.f32 %v813, %v1371
        %v1500 = vadd.f32 %v1372, %v1380
        %v1501 = vadd.f32 %v1500, %v1388
        %v1502 = vadd.f32 %v1501, %v1396
        %v1503 = vadd.f32 %v1502, %v1404
        %v1504 = vadd.f32 %v1503, %v1412
        %v1505 = vadd.f32 %v1504, %v1420
        %v1506 = vadd.f32 %v1505, %v1428
        %v1507 = vadd.f32 %v1506, %v1436
        %v1508 = vadd.f32 %v1507, %v1444
        %v1509 = vadd.f32 %v1508, %v1452
        %v1510 = vadd.f32 %v1509, %v1460
        %v1511 = vadd.f32 %v1510, %v1468
        %v1512 = vadd.f32 %v1511, %v1476
        %v1513 = vadd.f32 %v1512, %v1484
        %v1514 = vadd.f32 %v1513, %v1492
        %v1515 = vrot.slane %v1514, 4
        %v1516 = vadd.f32 %v1514, %v1515
        %v1517 = vrot.slane %v1516, 2
        %v1518 = vadd.f32 %v1516, %v1517
        %v1519 = vrot.slane %v1518, 1
        %v1520 = vadd.f32 %v1518, %v1519
        %v1521 = vadd.f32 %v1373, %v1381
        %v1522 = vadd.f32 %v1521, %v1389
        %v1523 = vadd.f32 %v1522, %v1397
        %v1524 = vadd.f32 %v1523, %v1405
        %v1525 = vadd.f32 %v1524, %v1413
        %v1526 = vadd.f32 %v1525, %v1421
        %v1527 = vadd.f32 %v1526, %v1429
        %v1528 = vadd.f32 %v1527, %v1437
        %v1529 = vadd.f32 %v1528, %v1445
        %v1530 = vadd.f32 %v1529, %v1453
        %v1531 = vadd.f32 %v1530, %v1461
        %v1532 = vadd.f32 %v1531, %v1469
        %v1533 = vadd.f32 %v1532, %v1477
        %v1534 = vadd.f32 %v1533, %v1485
        %v1535 = vadd.f32 %v1534, %v1493
        %v1536 = vrot.slane %v1535, 4
        %v1537 = vadd.f32 %v1535, %v1536
        %v1538 = vrot.slane %v1537, 2
        %v1539 = vadd.f32 %v1537, %v1538
        %v1540 = vrot.slane %v1539, 1
        %v1541 = vadd.f32 %v1539, %v1540
        %v1542 = vadd.f32 %v1374, %v1382
        %v1543 = vadd.f32 %v1542, %v1390
        %v1544 = vadd.f32 %v1543, %v1398
        %v1545 = vadd.f32 %v1544, %v1406
        %v1546 = vadd.f32 %v1545, %v1414
        %v1547 = vadd.f32 %v1546, %v1422
        %v1548 = vadd.f32 %v1547, %v1430
        %v1549 = vadd.f32 %v1548, %v1438
        %v1550 = vadd.f32 %v1549, %v1446
        %v1551 = vadd.f32 %v1550, %v1454
        %v1552 = vadd.f32 %v1551, %v1462
        %v1553 = vadd.f32 %v1552, %v1470
        %v1554 = vadd.f32 %v1553, %v1478
        %v1555 = vadd.f32 %v1554, %v1486
        %v1556 = vadd.f32 %v1555, %v1494
        %v1557 = vrot.slane %v1556, 4
        %v1558 = vadd.f32 %v1556, %v1557
        %v1559 = vrot.slane %v1558, 2
        %v1560 = vadd.f32 %v1558, %v1559
        %v1561 = vrot.slane %v1560, 1
        %v1562 = vadd.f32 %v1560, %v1561
        %v1563 = vadd.f32 %v1375, %v1383
        %v1564 = vadd.f32 %v1563, %v1391
        %v1565 = vadd.f32 %v1564, %v1399
        %v1566 = vadd.f32 %v1565, %v1407
        %v1567 = vadd.f32 %v1566, %v1415
        %v1568 = vadd.f32 %v1567, %v1423
        %v1569 = vadd.f32 %v1568, %v1431
        %v1570 = vadd.f32 %v1569, %v1439
        %v1571 = vadd.f32 %v1570, %v1447
        %v1572 = vadd.f32 %v1571, %v1455
        %v1573 = vadd.f32 %v1572, %v1463
        %v1574 = vadd.f32 %v1573, %v1471
        %v1575 = vadd.f32 %v1574, %v1479
        %v1576 = vadd.f32 %v1575, %v1487
        %v1577 = vadd.f32 %v1576, %v1495
        %v1578 = vrot.slane %v1577, 4
        %v1579 = vadd.f32 %v1577, %v1578
        %v1580 = vrot.slane %v1579, 2
        %v1581 = vadd.f32 %v1579, %v1580
        %v1582 = vrot.slane %v1581, 1
        %v1583 = vadd.f32 %v1581, %v1582
        %v1584 = vadd.f32 %v1376, %v1384
        %v1585 = vadd.f32 %v1584, %v1392
        %v1586 = vadd.f32 %v1585, %v1400
        %v1587 = vadd.f32 %v1586, %v1408
        %v1588 = vadd.f32 %v1587, %v1416
        %v1589 = vadd.f32 %v1588, %v1424
        %v1590 = vadd.f32 %v1589, %v1432
        %v1591 = vadd.f32 %v1590, %v1440
        %v1592 = vadd.f32 %v1591, %v1448
        %v1593 = vadd.f32 %v1592, %v1456
        %v1594 = vadd.f32 %v1593, %v1464
        %v1595 = vadd.f32 %v1594, %v1472
        %v1596 = vadd.f32 %v1595, %v1480
        %v1597 = vadd.f32 %v1596, %v1488
        %v1598 = vadd.f32 %v1597, %v1496
        %v1599 = vrot.slane %v1598, 4
        %v1600 = vadd.f32 %v1598, %v1599
        %v1601 = vrot.slane %v1600, 2
        %v1602 = vadd.f32 %v1600, %v1601
        %v1603 = vrot.slane %v1602, 1
        %v1604 = vadd.f32 %v1602, %v1603
        %v1605 = vadd.f32 %v1377, %v1385
        %v1606 = vadd.f32 %v1605, %v1393
        %v1607 = vadd.f32 %v1606, %v1401
        %v1608 = vadd.f32 %v1607, %v1409
        %v1609 = vadd.f32 %v1608, %v1417
        %v1610 = vadd.f32 %v1609, %v1425
        %v1611 = vadd.f32 %v1610, %v1433
        %v1612 = vadd.f32 %v1611, %v1441
        %v1613 = vadd.f32 %v1612, %v1449
        %v1614 = vadd.f32 %v1613, %v1457
        %v1615 = vadd.f32 %v1614, %v1465
        %v1616 = vadd.f32 %v1615, %v1473
        %v1617 = vadd.f32 %v1616, %v1481
        %v1618 = vadd.f32 %v1617, %v1489
        %v1619 = vadd.f32 %v1618, %v1497
        %v1620 = vrot.slane %v1619, 4
        %v1621 = vadd.f32 %v1619, %v1620
        %v1622 = vrot.slane %v1621, 2
        %v1623 = vadd.f32 %v1621, %v1622
        %v1624 = vrot.slane %v1623, 1
        %v1625 = vadd.f32 %v1623, %v1624
        %v1626 = vadd.f32 %v1378, %v1386
        %v1627 = vadd.f32 %v1626, %v1394
        %v1628 = vadd.f32 %v1627, %v1402
        %v1629 = vadd.f32 %v1628, %v1410
        %v1630 = vadd.f32 %v1629, %v1418
        %v1631 = vadd.f32 %v1630, %v1426
        %v1632 = vadd.f32 %v1631, %v1434
        %v1633 = vadd.f32 %v1632, %v1442
        %v1634 = vadd.f32 %v1633, %v1450
        %v1635 = vadd.f32 %v1634, %v1458
        %v1636 = vadd.f32 %v1635, %v1466
        %v1637 = vadd.f32 %v1636, %v1474
        %v1638 = vadd.f32 %v1637, %v1482
        %v1639 = vadd.f32 %v1638, %v1490
        %v1640 = vadd.f32 %v1639, %v1498
        %v1641 = vrot.slane %v1640, 4
        %v1642 = vadd.f32 %v1640, %v1641
        %v1643 = vrot.slane %v1642, 2
        %v1644 = vadd.f32 %v1642, %v1643
        %v1645 = vrot.slane %v1644, 1
        %v1646 = vadd.f32 %v1644, %v1645
        %v1647 = vadd.f32 %v1379, %v1387
        %v1648 = vadd.f32 %v1647, %v1395
        %v1649 = vadd.f32 %v1648, %v1403
        %v1650 = vadd.f32 %v1649, %v1411
        %v1651 = vadd.f32 %v1650, %v1419
        %v1652 = vadd.f32 %v1651, %v1427
        %v1653 = vadd.f32 %v1652, %v1435
        %v1654 = vadd.f32 %v1653, %v1443
        %v1655 = vadd.f32 %v1654, %v1451
        %v1656 = vadd.f32 %v1655, %v1459
        %v1657 = vadd.f32 %v1656, %v1467
        %v1658 = vadd.f32 %v1657, %v1475
        %v1659 = vadd.f32 %v1658, %v1483
        %v1660 = vadd.f32 %v1659, %v1491
        %v1661 = vadd.f32 %v1660, %v1499
        %v1662 = vrot.slane %v1661, 4
        %v1663 = vadd.f32 %v1661, %v1662
        %v1664 = vrot.slane %v1663, 2
        %v1665 = vadd.f32 %v1663, %v1664
        %v1666 = vrot.slane %v1665, 1
        %v1667 = vadd.f32 %v1665, %v1666
        %v1676 = vrot.slane %v1541, 7
        %v1677 = vrot.slane %v1562, 6
        %v1678 = vrot.slane %v1583, 5
        %v1679 = vrot.slane %v1604, 4
        %v1680 = vrot.slane %v1625, 3
        %v1681 = vrot.slane %v1646, 2
        %v1682 = vrot.slane %v1667, 1
        %vm1683 = vcmask 1040384
        %v1684 = vsel %vm1683, %v1520, %v1676
        %vm1685 = vcmask 1042434
        %v1686 = vsel %vm1685, %v1677, %v1678
        %vm1687 = vcmask 1041408
        %v1688 = vsel %vm1687, %v1684, %v1686
        %vm1689 = vcmask 1044484
        %v1690 = vsel %vm1689, %v1679, %v1680
        %vm1691 = vcmask 1046534
        %v1692 = vsel %vm1691, %v1681, %v1682
        %vm1693 = vcmask 1045508
        %v1694 = vsel %vm1693, %v1690, %v1692
        %vm1695 = vcmask 1043456
        %v1696 = vsel %vm1695, %v1688, %v1694
        %1698 = vst [vmem:[%s223] sm:$0xff] %v1696
        %s1699 = sand.u32 %s121, 1
        %s1700 = scalar_lea.sflag [#allocation3], %s1699
        %s1701 = sand.u32 %s121, 1
        %s1702 = smul.addr %s1701, 8
        %s1703 = scalar_lea.vmem [#allocation2], %s1702
        // Predicated region
        $region33: #{tpu_custom_call.1} parent=31 // pred_check
          %p1704 = pneg %p131
        $region34: #{tpu_custom_call.1} parent=31 // pred_check_branch
          %1706 = sbr.rel (%p1704) target = $region36
        $region35: #{tpu_custom_call.1} parent=31 // pred_region
          %1708 = vsyncadd %s1700, 0
          %s1709 = smul.addr %s22, 8
          %s1710 = smul.addr %s21, 16
          %s1711 = sadd.s32 %s1709, %s1710
          %s1712 = scalar_lea.hbm %s3, %s1711
          %s1714 = sshll.u32 %s1703, 4
          %s1715 = int_to_ptr.vmem [resolvable:$true] %s1714
          %s1716 = sshll.u32 %s1712, 4
          %s1717 = int_to_ptr.hbm [resolvable:$true] %s1716
          %1719 = dma.vmem_to_hbm [thread:$0]  %s1715, 128, %s1717, %s1700
        $region36: #{tpu_custom_call.1} parent=31 // pred_fallthru
          _
      $region32: #{tpu_custom_call.1} parent=5 // pred_fallthru
        _
      %p1720 = scmp.le.s32.totalorder 2, %s12
      // Predicated region
      $region37: #{tpu_custom_call.1} parent=5 // pred_check
        %p1721 = pneg %p1720
      $region38: #{tpu_custom_call.1} parent=5 // pred_check_branch
        %1723 = sbr.rel (%p1721) target = $region40
      $region39: #{tpu_custom_call.1} parent=5 // pred_region
        %s1724 = ssub.s32 %s12, 2
        // Predicated region
        $region41: #{tpu_custom_call.1} parent=39 // pred_check
          %p1725 = pneg %p137
        $region42: #{tpu_custom_call.1} parent=39 // pred_check_branch
          %1727 = sbr.rel (%p1725) target = $region44
        $region43: #{tpu_custom_call.1} parent=39 // pred_region
          %s1728 = sand.u32 %s122, 1
          %s1729 = scalar_lea.sflag [#allocation3], %s1728
          %s1730 = sand.u32 %s122, 1
          %s1731 = smul.addr %s1730, 8
          %s1732 = scalar_lea.vmem [#allocation2], %s1731
          %1734 = dma.done %s1729, 128
        $region44: #{tpu_custom_call.1} parent=39 // pred_fallthru
          _
      $region40: #{tpu_custom_call.1} parent=5 // pred_fallthru
        _
    $region6: #{tpu_custom_call.1} parent=1 // loop_footer
      %s16 = sadd.s32 1, %s12
    $region7: #{tpu_custom_call.1} parent=1 // loop_footer_branch
      %11 = sbr.rel target = $region3
    $region8: #{tpu_custom_call.1} parent=1 // loop_exit
      _
    %1735 = vsyncpa [#allocation3], 1
    %s1736 = scalar_lea.sflag [#allocation3], 1
    %1737 = vsyncpa %s1736, 1

</llo_original>
